<compile_context>
chip_gen: v7x
topology: tpu7x:2x2x1
jax: 0.10.0
libtpu: 0.0.40
codegen_flags: <defaults>
</compile_context>

<pallas_src>
import functools

import jax
import jax.numpy as jnp
from jax.experimental import pallas as pl
from jax.experimental.pallas import tpu as pltpu

LANE = 128      # vreg lane width
SUBLANE = 8     # f32 sublane count


def _round_up(x, m):
    return (x + m - 1) // m * m


# --------------------------------------------------------------------------- #
# Kernel
# --------------------------------------------------------------------------- #
def _vae_kernel(ma_ref,                        # SMEM (1,) f32: max_action
                sa_ref, eps_ref,               # streamed (tb, 128) bf16 tiles
                e1_w_ref, e1_b_ref,
                e2_w_ref, e2_b_ref,
                head_w_ref, head_b_ref,        # fused [mean | log_std] head
                d1_ws_ref, d1_wz_ref, d1_b_ref,
                d2_w_ref, d2_b_ref,
                d3_w_ref, d3_b_ref,
                u_ref, mean_ref, std_ref,
                *, latent_p):
    max_action = ma_ref[0]
    sa = sa_ref[...]                                           # bf16 [state|action]

    # ---------------- encoder ----------------
    h = jnp.dot(sa, e1_w_ref[...], preferred_element_type=jnp.float32)
    h = jnp.maximum(h + e1_b_ref[...], 0.0)
    h = jnp.dot(h.astype(jnp.bfloat16), e2_w_ref[...],
                preferred_element_type=jnp.float32)
    h = jnp.maximum(h + e2_b_ref[...], 0.0)

    # fused mean / log_std head: one matmul, static lane-aligned split
    head = (jnp.dot(h.astype(jnp.bfloat16), head_w_ref[...],
                    preferred_element_type=jnp.float32) + head_b_ref[...])
    mean = head[:, :latent_p]
    log_std = jnp.clip(head[:, latent_p:], -4.0, 15.0)
    std = jnp.exp(log_std)

    # Store mean/std NOW (before the decoder) so their vregs are released and the
    # output writeback DMA overlaps the decoder matmuls.
    mean_ref[...] = mean
    std_ref[...] = std

    # reparameterization trick (eps supplied from host; pad lanes of eps are zero,
    # so z pad lanes are exactly zero as well)
    z = mean + std * eps_ref[...].astype(jnp.float32)

    # ---------------- decoder ----------------
    # d1(cat([state, z])): the state term reuses the [state|action] slab — d1_ws
    # action rows are zero, so the action lanes contribute nothing.
    d = jnp.dot(sa, d1_ws_ref[...], preferred_element_type=jnp.float32)
    d = d + jnp.dot(z.astype(jnp.bfloat16), d1_wz_ref[...],
                    preferred_element_type=jnp.float32)
    d = jnp.maximum(d + d1_b_ref[...], 0.0)
    d = jnp.maximum(
        jnp.dot(d.astype(jnp.bfloat16), d2_w_ref[...],
                preferred_element_type=jnp.float32) + d2_b_ref[...], 0.0)
    u = max_action * jnp.tanh(
        jnp.dot(d.astype(jnp.bfloat16), d3_w_ref[...],
                preferred_element_type=jnp.float32) + d3_b_ref[...])
    u_ref[...] = u


# --------------------------------------------------------------------------- #
# Parameter packing: fuse / zero-pad to 128-lane multiples, cast to bf16 (once)
# --------------------------------------------------------------------------- #
def pack_params(p, state_dim, action_dim, latent_dim, hidden_dim,
                weight_dtype=jnp.bfloat16):
    sap = _round_up(state_dim + action_dim, LANE)   # [state|action] slab width
    ap = _round_up(action_dim, LANE)
    lp = _round_up(latent_dim, LANE)
    hp = _round_up(hidden_dim, LANE)

    def pad_w(w, rows, cols):
        return jnp.pad(w, ((0, rows - w.shape[0]),
                           (0, cols - w.shape[1]))).astype(weight_dtype)

    def pad_b(b, cols):
        # biases stay f32 (post-matmul math is f32 on all generations)
        return jnp.pad(b, ((0, 0), (0, cols - b.shape[1]))).astype(jnp.float32)

    packed = {
        # e1 consumes the whole [state|action] slab directly
        "e1_w": pad_w(p["e1_w"], sap, hp),
        "e1_b": pad_b(p["e1_b"], hp),
        "e2_w": pad_w(p["e2_w"], hp, hp),
        "e2_b": pad_b(p["e2_b"], hp),
        # fused [mean | log_std] head
        "head_w": jnp.concatenate(
            [pad_w(p["mean_w"], hp, lp), pad_w(p["ls_w"], hp, lp)], axis=1),
        "head_b": jnp.concatenate(
            [pad_b(p["mean_b"], lp), pad_b(p["ls_b"], lp)], axis=1),
        # d1 split over the [state | z] concat; d1_ws is padded to the full
        # [state|action] slab width with zero rows over the action lanes.
        "d1_ws": pad_w(p["d1_w"][:state_dim], sap, hp),
        "d1_wz": pad_w(p["d1_w"][state_dim:], lp, hp),
        "d1_b": pad_b(p["d1_b"], hp),
        "d2_w": pad_w(p["d2_w"], hp, hp),
        "d2_b": pad_b(p["d2_b"], hp),
        "d3_w": pad_w(p["d3_w"], hp, ap),
        "d3_b": pad_b(p["d3_b"], ap),
    }
    return packed


_WEIGHT_ORDER = ("e1_w", "e1_b", "e2_w", "e2_b", "head_w", "head_b",
                 "d1_ws", "d1_wz", "d1_b", "d2_w", "d2_b", "d3_w", "d3_b")


# --------------------------------------------------------------------------- #
# Wrapper
# --------------------------------------------------------------------------- #
def vae_forward(state, action, eps, packed, max_action, *, block_b=512,
                input_dtype=jnp.bfloat16):
    """Full VAE forward in one pallas_call. Returns (u, mean, std) unpadded."""
    B, state_dim = state.shape
    action_dim = action.shape[1]
    latent_dim = eps.shape[1]

    sap = packed["e1_w"].shape[0]
    lp = packed["d1_wz"].shape[0]
    ap = packed["d3_w"].shape[1]

    # Batch tile: multiple of the 8-row sublane; block_b=512 keeps double-buffered
    # f32 activation tiles far under every generation's scoped VMEM while reaching
    # ~85%+ of HBM roofline. Guarantee >= 2 grid steps so ("parallel",) can shard
    # the batch across both v7x TensorCores (harmless no-op on v5e/v6e).
    tb = min(block_b, _round_up(B, SUBLANE))
    bp = _round_up(B, tb)
    if bp // tb < 2:
        tb = max(SUBLANE, _round_up(pl.cdiv(B, 2), SUBLANE))
        bp = 2 * tb
    nb = bp // tb

    # Single host-side concat + pad: one [state|action] slab feeds both e1 and d1's
    # state term. eps pad lanes/rows MUST stay zero (z pad lanes rely on it).
    sa = jnp.concatenate([state, action], axis=1).astype(input_dtype)
    sa_p = jnp.pad(sa, ((0, bp - B), (0, sap - sa.shape[1])))
    eps_p = jnp.pad(eps.astype(input_dtype), ((0, bp - B), (0, lp - latent_dim)))

    def batch_spec(cols):
        return pl.BlockSpec((tb, cols), lambda i: (i, 0))

    # Whole-array, single-buffered, VMEM-resident weights (DMA'd once; no 2x
    # residency from default double-buffering).
    vmem_resident = pl.BlockSpec(memory_space=pltpu.MemorySpace.VMEM)
    smem_scalar = pl.BlockSpec(memory_space=pltpu.MemorySpace.SMEM)

    weight_args = [packed[name] for name in _WEIGHT_ORDER]

    out_shape = (
        jax.ShapeDtypeStruct((bp, ap), jnp.float32),   # u    (lane-padded)
        jax.ShapeDtypeStruct((bp, lp), jnp.float32),   # mean (lane-padded)
        jax.ShapeDtypeStruct((bp, lp), jnp.float32),   # std  (lane-padded)
    )

    max_action_arr = jnp.full((1,), max_action, dtype=jnp.float32)

    u_p, mean_p, std_p = pl.pallas_call(
        functools.partial(_vae_kernel, latent_p=lp),
        out_shape=out_shape,
        grid=(nb,),
        in_specs=[smem_scalar,                 # max_action
                  batch_spec(sap),             # [state|action]
                  batch_spec(lp)]              # eps
                 + [vmem_resident] * len(weight_args),
        out_specs=[batch_spec(ap), batch_spec(lp), batch_spec(lp)],
        compiler_params=pltpu.CompilerParams(
            dimension_semantics=("parallel",),            # shard batch across TCs
            vmem_limit_bytes=48 * 1024 * 1024),           # v5e default is only 16 MiB
    )(max_action_arr, sa_p, eps_p, *weight_args)

    # NOTE: padded lanes of std come out as exp(0)=1.0 — always slice before use.
    return (u_p[:B, :action_dim], mean_p[:B, :latent_dim], std_p[:B, :latent_dim])


# --------------------------------------------------------------------------- #
# Reference parameters / reference forward (PyTorch-equivalent layout)
# --------------------------------------------------------------------------- #
def init_params(key, state_dim, action_dim, latent_dim, hidden_dim):
    """Synthetic nn.Linear-style params, stored as (in_features, out_features)."""
    def lin(k, fan_in, fan_out):
        kw, kb = jax.random.split(k)
        scale = 1.0 / jnp.sqrt(fan_in)
        w = jax.random.uniform(kw, (fan_in, fan_out), jnp.float32, -scale, scale)
        b = jax.random.uniform(kb, (1, fan_out), jnp.float32, -scale, scale)
        return w, b

    keys = jax.random.split(key, 7)
    e1_w, e1_b = lin(keys[0], state_dim + action_dim, hidden_dim)
    e2_w, e2_b = lin(keys[1], hidden_dim, hidden_dim)
    mean_w, mean_b = lin(keys[2], hidden_dim, latent_dim)
    ls_w, ls_b = lin(keys[3], hidden_dim, latent_dim)
    d1_w, d1_b = lin(keys[4], state_dim + latent_dim, hidden_dim)
    d2_w, d2_b = lin(keys[5], hidden_dim, hidden_dim)
    d3_w, d3_b = lin(keys[6], hidden_dim, action_dim)
    return {"e1_w": e1_w, "e1_b": e1_b, "e2_w": e2_w, "e2_b": e2_b,
            "mean_w": mean_w, "mean_b": mean_b, "ls_w": ls_w, "ls_b": ls_b,
            "d1_w": d1_w, "d1_b": d1_b, "d2_w": d2_w, "d2_b": d2_b,
            "d3_w": d3_w, "d3_b": d3_b}


def vae_forward_ref(state, action, eps, p, max_action):
    """Plain-JAX f32 reference mirroring the PyTorch module exactly."""
    sa = jnp.concatenate([state, action], axis=1)
    h = jax.nn.relu(sa @ p["e1_w"] + p["e1_b"])
    h = jax.nn.relu(h @ p["e2_w"] + p["e2_b"])
    mean = h @ p["mean_w"] + p["mean_b"]
    log_std = jnp.clip(h @ p["ls_w"] + p["ls_b"], -4.0, 15.0)
    std = jnp.exp(log_std)
    z = mean + std * eps
    sz = jnp.concatenate([state, z], axis=1)
    d = jax.nn.relu(sz @ p["d1_w"] + p["d1_b"])
    d = jax.nn.relu(d @ p["d2_w"] + p["d2_b"])
    u = max_action * jnp.tanh(d @ p["d3_w"] + p["d3_b"])
    return u, mean, std


if __name__ == "__main__":
    # Small shapes consistent with the module's forward.
    B, STATE_DIM, ACTION_DIM, LATENT_DIM, HIDDEN_DIM = 8, 16, 8, 8, 32
    MAX_ACTION = 2.5

    key = jax.random.PRNGKey(0)
    k_state, k_action, k_eps, k_params = jax.random.split(key, 4)

    state = jax.random.normal(k_state, (B, STATE_DIM), jnp.float32)
    action = jax.random.normal(k_action, (B, ACTION_DIM), jnp.float32)
    # TODO(synk): torch.randn_like(std) has no in-kernel equivalent used here;
    # the noise is supplied deterministically as `eps` from jax.random.normal.
    eps = jax.random.normal(k_eps, (B, LATENT_DIM), jnp.float32)

    params = init_params(k_params, STATE_DIM, ACTION_DIM, LATENT_DIM, HIDDEN_DIM)
    packed = pack_params(params, STATE_DIM, ACTION_DIM, LATENT_DIM, HIDDEN_DIM)

    u, mean, std = jax.block_until_ready(
        vae_forward(state, action, eps, packed, MAX_ACTION))

    u_r, mean_r, std_r = vae_forward_ref(state, action, eps, params, MAX_ACTION)
    assert u.shape == (B, ACTION_DIM)
    assert mean.shape == (B, LATENT_DIM) and std.shape == (B, LATENT_DIM)
    # bf16 weights/activation casts -> compare against the f32 reference with a
    # correspondingly relaxed tolerance (per perf review).
    assert jnp.allclose(u, u_r, atol=5e-2, rtol=5e-2)
    assert jnp.allclose(mean, mean_r, atol=5e-2, rtol=5e-2)
    assert jnp.allclose(std, std_r, atol=5e-2, rtol=5e-2)

    print("KERNEL_OK")
</pallas_src>

<mosaic_0001>
module attributes {stable_mosaic.version = 11 : i64} {
  func.func @_vae_kernel(%arg0: i32, %arg1: memref<1xf32, #tpu.memory_space<smem>>, %arg2: memref<8x128xbf16, #tpu.memory_space<vmem>>, %arg3: memref<8x128xbf16, #tpu.memory_space<vmem>>, %arg4: memref<128x128xbf16, #tpu.memory_space<vmem>>, %arg5: memref<1x128xf32, #tpu.memory_space<vmem>>, %arg6: memref<128x128xbf16, #tpu.memory_space<vmem>>, %arg7: memref<1x128xf32, #tpu.memory_space<vmem>>, %arg8: memref<128x256xbf16, #tpu.memory_space<vmem>>, %arg9: memref<1x256xf32, #tpu.memory_space<vmem>>, %arg10: memref<128x128xbf16, #tpu.memory_space<vmem>>, %arg11: memref<128x128xbf16, #tpu.memory_space<vmem>>, %arg12: memref<1x128xf32, #tpu.memory_space<vmem>>, %arg13: memref<128x128xbf16, #tpu.memory_space<vmem>>, %arg14: memref<1x128xf32, #tpu.memory_space<vmem>>, %arg15: memref<128x128xbf16, #tpu.memory_space<vmem>>, %arg16: memref<1x128xf32, #tpu.memory_space<vmem>>, %arg17: memref<8x128xf32, #tpu.memory_space<vmem>>, %arg18: memref<8x128xf32, #tpu.memory_space<vmem>>, %arg19: memref<8x128xf32, #tpu.memory_space<vmem>>) attributes {dimension_semantics = [#tpu.dimension_semantics<parallel>], iteration_bounds = array<i64: 2>, scalar_prefetch = 0 : i64, scratch_operands = 0 : i64, tpu.core_type = #tpu.core_type<tc>, window_params = [{transform_indices = @transform_0, window_bounds = array<i64: 1>}, {transform_indices = @transform_1, window_bounds = array<i64: 8, 128>}, {transform_indices = @transform_2, window_bounds = array<i64: 8, 128>}, {pipeline_mode = #tpu.pipeline_mode<synchronous>, transform_indices = @transform_3, window_bounds = array<i64: 128, 128>}, {pipeline_mode = #tpu.pipeline_mode<synchronous>, transform_indices = @transform_4, window_bounds = array<i64: 1, 128>}, {pipeline_mode = #tpu.pipeline_mode<synchronous>, transform_indices = @transform_5, window_bounds = array<i64: 128, 128>}, {pipeline_mode = #tpu.pipeline_mode<synchronous>, transform_indices = @transform_6, window_bounds = array<i64: 1, 128>}, {pipeline_mode = #tpu.pipeline_mode<synchronous>, transform_indices = @transform_7, window_bounds = array<i64: 128, 256>}, {pipeline_mode = #tpu.pipeline_mode<synchronous>, transform_indices = @transform_8, window_bounds = array<i64: 1, 256>}, {pipeline_mode = #tpu.pipeline_mode<synchronous>, transform_indices = @transform_9, window_bounds = array<i64: 128, 128>}, {pipeline_mode = #tpu.pipeline_mode<synchronous>, transform_indices = @transform_10, window_bounds = array<i64: 128, 128>}, {pipeline_mode = #tpu.pipeline_mode<synchronous>, transform_indices = @transform_11, window_bounds = array<i64: 1, 128>}, {pipeline_mode = #tpu.pipeline_mode<synchronous>, transform_indices = @transform_12, window_bounds = array<i64: 128, 128>}, {pipeline_mode = #tpu.pipeline_mode<synchronous>, transform_indices = @transform_13, window_bounds = array<i64: 1, 128>}, {pipeline_mode = #tpu.pipeline_mode<synchronous>, transform_indices = @transform_14, window_bounds = array<i64: 128, 128>}, {pipeline_mode = #tpu.pipeline_mode<synchronous>, transform_indices = @transform_15, window_bounds = array<i64: 1, 128>}, {transform_indices = @transform_16, window_bounds = array<i64: 8, 128>}, {transform_indices = @transform_17, window_bounds = array<i64: 8, 128>}, {transform_indices = @transform_18, window_bounds = array<i64: 8, 128>}]} {
    %c0 = arith.constant 0 : index
    %0 = memref.load %arg1[%c0] : memref<1xf32, #tpu.memory_space<smem>>
    %c0_0 = arith.constant 0 : index
    %c0_1 = arith.constant 0 : index
    %1 = vector.load %arg2[%c0_0, %c0_1] : memref<8x128xbf16, #tpu.memory_space<vmem>>, vector<8x128xbf16>
    %c0_2 = arith.constant 0 : index
    %c0_3 = arith.constant 0 : index
    %2 = vector.load %arg4[%c0_2, %c0_3] : memref<128x128xbf16, #tpu.memory_space<vmem>>, vector<128x128xbf16>
    %cst = arith.constant dense<0.000000e+00> : vector<8x128xf32>
    %3 = tpu.matmul %1, %2, %cst {dimension_numbers = #tpu.dot_dimension_numbers<[1], [0], [0], [1], [0, 0, 1, 1], [], []>} : vector<8x128xbf16>, vector<128x128xbf16>, vector<8x128xf32> -> vector<8x128xf32>
    %c0_4 = arith.constant 0 : index
    %c0_5 = arith.constant 0 : index
    %4 = vector.load %arg5[%c0_4, %c0_5] : memref<1x128xf32, #tpu.memory_space<vmem>>, vector<1x128xf32>
    %5 = vector.broadcast %4 : vector<1x128xf32> to vector<8x128xf32>
    %6 = arith.addf %3, %5 : vector<8x128xf32>
    %cst_6 = arith.constant 0.000000e+00 : f32
    %7 = vector.broadcast %cst_6 : f32 to vector<8x128xf32>
    %8 = arith.maximumf %6, %7 : vector<8x128xf32>
    %9 = arith.truncf %8 : vector<8x128xf32> to vector<8x128xbf16>
    %c0_7 = arith.constant 0 : index
    %c0_8 = arith.constant 0 : index
    %10 = vector.load %arg6[%c0_7, %c0_8] : memref<128x128xbf16, #tpu.memory_space<vmem>>, vector<128x128xbf16>
    %cst_9 = arith.constant dense<0.000000e+00> : vector<8x128xf32>
    %11 = tpu.matmul %9, %10, %cst_9 {dimension_numbers = #tpu.dot_dimension_numbers<[1], [0], [0], [1], [0, 0, 1, 1], [], []>} : vector<8x128xbf16>, vector<128x128xbf16>, vector<8x128xf32> -> vector<8x128xf32>
    %c0_10 = arith.constant 0 : index
    %c0_11 = arith.constant 0 : index
    %12 = vector.load %arg7[%c0_10, %c0_11] : memref<1x128xf32, #tpu.memory_space<vmem>>, vector<1x128xf32>
    %13 = vector.broadcast %12 : vector<1x128xf32> to vector<8x128xf32>
    %14 = arith.addf %11, %13 : vector<8x128xf32>
    %cst_12 = arith.constant 0.000000e+00 : f32
    %15 = vector.broadcast %cst_12 : f32 to vector<8x128xf32>
    %16 = arith.maximumf %14, %15 : vector<8x128xf32>
    %17 = arith.truncf %16 : vector<8x128xf32> to vector<8x128xbf16>
    %c0_13 = arith.constant 0 : index
    %c0_14 = arith.constant 0 : index
    %18 = vector.load %arg8[%c0_13, %c0_14] : memref<128x256xbf16, #tpu.memory_space<vmem>>, vector<128x256xbf16>
    %cst_15 = arith.constant dense<0.000000e+00> : vector<8x256xf32>
    %19 = tpu.matmul %17, %18, %cst_15 {dimension_numbers = #tpu.dot_dimension_numbers<[1], [0], [0], [1], [0, 0, 1, 1], [], []>} : vector<8x128xbf16>, vector<128x256xbf16>, vector<8x256xf32> -> vector<8x256xf32>
    %c0_16 = arith.constant 0 : index
    %c0_17 = arith.constant 0 : index
    %20 = vector.load %arg9[%c0_16, %c0_17] : memref<1x256xf32, #tpu.memory_space<vmem>>, vector<1x256xf32>
    %21 = vector.broadcast %20 : vector<1x256xf32> to vector<8x256xf32>
    %22 = arith.addf %19, %21 : vector<8x256xf32>
    %23 = vector.extract_strided_slice %22 {offsets = [0, 0], sizes = [8, 128], strides = [1, 1]} : vector<8x256xf32> to vector<8x128xf32>
    %24 = vector.extract_strided_slice %22 {offsets = [0, 128], sizes = [8, 128], strides = [1, 1]} : vector<8x256xf32> to vector<8x128xf32>
    %cst_18 = arith.constant -4.000000e+00 : f32
    %cst_19 = arith.constant 1.500000e+01 : f32
    %25 = vector.broadcast %cst_18 : f32 to vector<8x128xf32>
    %26 = arith.maximumf %25, %24 : vector<8x128xf32>
    %27 = vector.broadcast %cst_19 : f32 to vector<8x128xf32>
    %28 = arith.minimumf %27, %26 : vector<8x128xf32>
    %29 = math.exp %28 : vector<8x128xf32>
    %c0_20 = arith.constant 0 : index
    %c0_21 = arith.constant 0 : index
    %30 = vector.load %arg18[%c0_20, %c0_21] : memref<8x128xf32, #tpu.memory_space<vmem>>, vector<8x128xf32>
    tpu.vector_store %arg18[%c0_20, %c0_21], %23 {strides = array<i32>} : memref<8x128xf32, #tpu.memory_space<vmem>>, vector<8x128xf32>,
    %c0_22 = arith.constant 0 : index
    %c0_23 = arith.constant 0 : index
    %31 = vector.load %arg19[%c0_22, %c0_23] : memref<8x128xf32, #tpu.memory_space<vmem>>, vector<8x128xf32>
    tpu.vector_store %arg19[%c0_22, %c0_23], %29 {strides = array<i32>} : memref<8x128xf32, #tpu.memory_space<vmem>>, vector<8x128xf32>,
    %c0_24 = arith.constant 0 : index
    %c0_25 = arith.constant 0 : index
    %32 = vector.load %arg3[%c0_24, %c0_25] : memref<8x128xbf16, #tpu.memory_space<vmem>>, vector<8x128xbf16>
    %33 = arith.extf %32 : vector<8x128xbf16> to vector<8x128xf32>
    %34 = arith.mulf %29, %33 : vector<8x128xf32>
    %35 = arith.addf %23, %34 : vector<8x128xf32>
    %c0_26 = arith.constant 0 : index
    %c0_27 = arith.constant 0 : index
    %36 = vector.load %arg10[%c0_26, %c0_27] : memref<128x128xbf16, #tpu.memory_space<vmem>>, vector<128x128xbf16>
    %cst_28 = arith.constant dense<0.000000e+00> : vector<8x128xf32>
    %37 = tpu.matmul %1, %36, %cst_28 {dimension_numbers = #tpu.dot_dimension_numbers<[1], [0], [0], [1], [0, 0, 1, 1], [], []>} : vector<8x128xbf16>, vector<128x128xbf16>, vector<8x128xf32> -> vector<8x128xf32>
    %38 = arith.truncf %35 : vector<8x128xf32> to vector<8x128xbf16>
    %c0_29 = arith.constant 0 : index
    %c0_30 = arith.constant 0 : index
    %39 = vector.load %arg11[%c0_29, %c0_30] : memref<128x128xbf16, #tpu.memory_space<vmem>>, vector<128x128xbf16>
    %cst_31 = arith.constant dense<0.000000e+00> : vector<8x128xf32>
    %40 = tpu.matmul %38, %39, %cst_31 {dimension_numbers = #tpu.dot_dimension_numbers<[1], [0], [0], [1], [0, 0, 1, 1], [], []>} : vector<8x128xbf16>, vector<128x128xbf16>, vector<8x128xf32> -> vector<8x128xf32>
    %41 = arith.addf %37, %40 : vector<8x128xf32>
    %c0_32 = arith.constant 0 : index
    %c0_33 = arith.constant 0 : index
    %42 = vector.load %arg12[%c0_32, %c0_33] : memref<1x128xf32, #tpu.memory_space<vmem>>, vector<1x128xf32>
    %43 = vector.broadcast %42 : vector<1x128xf32> to vector<8x128xf32>
    %44 = arith.addf %41, %43 : vector<8x128xf32>
    %cst_34 = arith.constant 0.000000e+00 : f32
    %45 = vector.broadcast %cst_34 : f32 to vector<8x128xf32>
    %46 = arith.maximumf %44, %45 : vector<8x128xf32>
    %47 = arith.truncf %46 : vector<8x128xf32> to vector<8x128xbf16>
    %c0_35 = arith.constant 0 : index
    %c0_36 = arith.constant 0 : index
    %48 = vector.load %arg13[%c0_35, %c0_36] : memref<128x128xbf16, #tpu.memory_space<vmem>>, vector<128x128xbf16>
    %cst_37 = arith.constant dense<0.000000e+00> : vector<8x128xf32>
    %49 = tpu.matmul %47, %48, %cst_37 {dimension_numbers = #tpu.dot_dimension_numbers<[1], [0], [0], [1], [0, 0, 1, 1], [], []>} : vector<8x128xbf16>, vector<128x128xbf16>, vector<8x128xf32> -> vector<8x128xf32>
    %c0_38 = arith.constant 0 : index
    %c0_39 = arith.constant 0 : index
    %50 = vector.load %arg14[%c0_38, %c0_39] : memref<1x128xf32, #tpu.memory_space<vmem>>, vector<1x128xf32>
    %51 = vector.broadcast %50 : vector<1x128xf32> to vector<8x128xf32>
    %52 = arith.addf %49, %51 : vector<8x128xf32>
    %cst_40 = arith.constant 0.000000e+00 : f32
    %53 = vector.broadcast %cst_40 : f32 to vector<8x128xf32>
    %54 = arith.maximumf %52, %53 : vector<8x128xf32>
    %55 = arith.truncf %54 : vector<8x128xf32> to vector<8x128xbf16>
    %c0_41 = arith.constant 0 : index
    %c0_42 = arith.constant 0 : index
    %56 = vector.load %arg15[%c0_41, %c0_42] : memref<128x128xbf16, #tpu.memory_space<vmem>>, vector<128x128xbf16>
    %cst_43 = arith.constant dense<0.000000e+00> : vector<8x128xf32>
    %57 = tpu.matmul %55, %56, %cst_43 {dimension_numbers = #tpu.dot_dimension_numbers<[1], [0], [0], [1], [0, 0, 1, 1], [], []>} : vector<8x128xbf16>, vector<128x128xbf16>, vector<8x128xf32> -> vector<8x128xf32>
    %c0_44 = arith.constant 0 : index
    %c0_45 = arith.constant 0 : index
    %58 = vector.load %arg16[%c0_44, %c0_45] : memref<1x128xf32, #tpu.memory_space<vmem>>, vector<1x128xf32>
    %59 = vector.broadcast %58 : vector<1x128xf32> to vector<8x128xf32>
    %60 = arith.addf %57, %59 : vector<8x128xf32>
    %61 = math.tanh %60 : vector<8x128xf32>
    %62 = vector.broadcast %0 : f32 to vector<8x128xf32>
    %63 = arith.mulf %62, %61 : vector<8x128xf32>
    %c0_46 = arith.constant 0 : index
    %c0_47 = arith.constant 0 : index
    %64 = vector.load %arg17[%c0_46, %c0_47] : memref<8x128xf32, #tpu.memory_space<vmem>>, vector<8x128xf32>
    tpu.vector_store %arg17[%c0_46, %c0_47], %63 {strides = array<i32>} : memref<8x128xf32, #tpu.memory_space<vmem>>, vector<8x128xf32>,
    return
  }
  func.func @transform_0(%arg0: i32) -> i32 {
    %c0_i32 = arith.constant 0 : i32
    %c0_i32_0 = arith.constant 0 : i32
    return %c0_i32 : i32
  }
  func.func @transform_1(%arg0: i32) -> (i32, i32) {
    %c0_i32 = arith.constant 0 : i32
    %c0_i32_0 = arith.constant 0 : i32
    return %arg0, %c0_i32 : i32, i32
  }
  func.func @transform_2(%arg0: i32) -> (i32, i32) {
    %c0_i32 = arith.constant 0 : i32
    %c0_i32_0 = arith.constant 0 : i32
    return %arg0, %c0_i32 : i32, i32
  }
  func.func @transform_3(%arg0: i32) -> (i32, i32) {
    %c0_i32 = arith.constant 0 : i32
    %c0_i32_0 = arith.constant 0 : i32
    %c0_i32_1 = arith.constant 0 : i32
    return %c0_i32, %c0_i32_0 : i32, i32
  }
  func.func @transform_4(%arg0: i32) -> (i32, i32) {
    %c0_i32 = arith.constant 0 : i32
    %c0_i32_0 = arith.constant 0 : i32
    %c0_i32_1 = arith.constant 0 : i32
    return %c0_i32, %c0_i32_0 : i32, i32
  }
  func.func @transform_5(%arg0: i32) -> (i32, i32) {
    %c0_i32 = arith.constant 0 : i32
    %c0_i32_0 = arith.constant 0 : i32
    %c0_i32_1 = arith.constant 0 : i32
    return %c0_i32, %c0_i32_0 : i32, i32
  }
  func.func @transform_6(%arg0: i32) -> (i32, i32) {
    %c0_i32 = arith.constant 0 : i32
    %c0_i32_0 = arith.constant 0 : i32
    %c0_i32_1 = arith.constant 0 : i32
    return %c0_i32, %c0_i32_0 : i32, i32
  }
  func.func @transform_7(%arg0: i32) -> (i32, i32) {
    %c0_i32 = arith.constant 0 : i32
    %c0_i32_0 = arith.constant 0 : i32
    %c0_i32_1 = arith.constant 0 : i32
    return %c0_i32, %c0_i32_0 : i32, i32
  }
  func.func @transform_8(%arg0: i32) -> (i32, i32) {
    %c0_i32 = arith.constant 0 : i32
    %c0_i32_0 = arith.constant 0 : i32
    %c0_i32_1 = arith.constant 0 : i32
    return %c0_i32, %c0_i32_0 : i32, i32
  }
  func.func @transform_9(%arg0: i32) -> (i32, i32) {
    %c0_i32 = arith.constant 0 : i32
    %c0_i32_0 = arith.constant 0 : i32
    %c0_i32_1 = arith.constant 0 : i32
    return %c0_i32, %c0_i32_0 : i32, i32
  }
  func.func @transform_10(%arg0: i32) -> (i32, i32) {
    %c0_i32 = arith.constant 0 : i32
    %c0_i32_0 = arith.constant 0 : i32
    %c0_i32_1 = arith.constant 0 : i32
    return %c0_i32, %c0_i32_0 : i32, i32
  }
  func.func @transform_11(%arg0: i32) -> (i32, i32) {
    %c0_i32 = arith.constant 0 : i32
    %c0_i32_0 = arith.constant 0 : i32
    %c0_i32_1 = arith.constant 0 : i32
    return %c0_i32, %c0_i32_0 : i32, i32
  }
  func.func @transform_12(%arg0: i32) -> (i32, i32) {
    %c0_i32 = arith.constant 0 : i32
    %c0_i32_0 = arith.constant 0 : i32
    %c0_i32_1 = arith.constant 0 : i32
    return %c0_i32, %c0_i32_0 : i32, i32
  }
  func.func @transform_13(%arg0: i32) -> (i32, i32) {
    %c0_i32 = arith.constant 0 : i32
    %c0_i32_0 = arith.constant 0 : i32
    %c0_i32_1 = arith.constant 0 : i32
    return %c0_i32, %c0_i32_0 : i32, i32
  }
  func.func @transform_14(%arg0: i32) -> (i32, i32) {
    %c0_i32 = arith.constant 0 : i32
    %c0_i32_0 = arith.constant 0 : i32
    %c0_i32_1 = arith.constant 0 : i32
    return %c0_i32, %c0_i32_0 : i32, i32
  }
  func.func @transform_15(%arg0: i32) -> (i32, i32) {
    %c0_i32 = arith.constant 0 : i32
    %c0_i32_0 = arith.constant 0 : i32
    %c0_i32_1 = arith.constant 0 : i32
    return %c0_i32, %c0_i32_0 : i32, i32
  }
  func.func @transform_16(%arg0: i32) -> (i32, i32) {
    %c0_i32 = arith.constant 0 : i32
    %c0_i32_0 = arith.constant 0 : i32
    return %arg0, %c0_i32 : i32, i32
  }
  func.func @transform_17(%arg0: i32) -> (i32, i32) {
    %c0_i32 = arith.constant 0 : i32
    %c0_i32_0 = arith.constant 0 : i32
    return %arg0, %c0_i32 : i32, i32
  }
  func.func @transform_18(%arg0: i32) -> (i32, i32) {
    %c0_i32 = arith.constant 0 : i32
    %c0_i32_0 = arith.constant 0 : i32
    return %arg0, %c0_i32 : i32, i32
  }
}

</mosaic_0001>

<llo_original>
// kernel: tpu_custom_call.1
$region0: #{tpu_custom_call.1}
  #allocation0 [shape = 'u32[]', space=smem, size = 0x4, offset = 0x4, fixed_abs, tag = 'smem constant byte address 0x4 - core index']
  #allocation1 [shape = 'u32[144,128]{1,0:T(1,128)}', space=vmem, size = 0x12000, scoped, tag = 'internal scratch']
  #allocation2 [shape = 'f32[1]{0:T(128)S(6)}', space=smem, size = 0x200, scoped, tag = 'scoped memory for tpu_custom_call.1']
  %s0 = inlined_call_operand.<no memory space> [shape: f32[1], index: 0, kind: input, shape index: {}]
  %s1 = inlined_call_operand.hbm [shape: bf16[16,128], index: 1, kind: input, shape index: {}]
  %s2 = inlined_call_operand.hbm [shape: bf16[16,128], index: 2, kind: input, shape index: {}]
  %s3 = inlined_call_operand.hbm [shape: bf16[128,128], index: 3, kind: input, shape index: {}]
  %s4 = inlined_call_operand.vmem [shape: f32[1,128], index: 4, kind: input, shape index: {}]
  %s5 = inlined_call_operand.hbm [shape: bf16[128,128], index: 5, kind: input, shape index: {}]
  %s6 = inlined_call_operand.vmem [shape: f32[1,128], index: 6, kind: input, shape index: {}]
  %s7 = inlined_call_operand.hbm [shape: bf16[128,256], index: 7, kind: input, shape index: {}]
  %s8 = inlined_call_operand.vmem [shape: f32[1,256], index: 8, kind: input, shape index: {}]
  %s9 = inlined_call_operand.hbm [shape: bf16[128,128], index: 9, kind: input, shape index: {}]
  %s10 = inlined_call_operand.hbm [shape: bf16[128,128], index: 10, kind: input, shape index: {}]
  %s11 = inlined_call_operand.vmem [shape: f32[1,128], index: 11, kind: input, shape index: {}]
  %s12 = inlined_call_operand.hbm [shape: bf16[128,128], index: 12, kind: input, shape index: {}]
  %s13 = inlined_call_operand.vmem [shape: f32[1,128], index: 13, kind: input, shape index: {}]
  %s14 = inlined_call_operand.hbm [shape: bf16[128,128], index: 14, kind: input, shape index: {}]
  %s15 = inlined_call_operand.vmem [shape: f32[1,128], index: 15, kind: input, shape index: {}]
  %s16 = inlined_call_operand.hbm [shape: f32[16,128], index: 16, kind: output, shape index: {0}]
  %s17 = inlined_call_operand.hbm [shape: f32[16,128], index: 17, kind: output, shape index: {1}]
  %s18 = inlined_call_operand.hbm [shape: f32[16,128], index: 18, kind: output, shape index: {2}]
  %19 = xla_tuple %s16, %s17, %s18
  %s20 = sld [smem:[#allocation0]]
  $region149: #{tpu_custom_call.1} parent=0
    _
  %s22 = ssub.s32 1, %s20
  %s23 = scalar_select 0, %s22, %s20
  %24 = sst [smem:[#allocation2]] %s0
  $region1: #{tpu_custom_call.1} parent=0
    #allocation3 [shape = 'u8[4096]{0}', space=vmem, size = 0x1000, scoped, tag = 'input window, operand 1']
    #allocation4 [shape = 's32[2]{0}', space=sflag, size = 0x8, scoped, tag = 'scoped memory for tpu_custom_call.1']
    #allocation5 [shape = 's32[2]{0}', space=sflag, size = 0x8, scoped, tag = 'scoped memory for tpu_custom_call.1']
    #allocation6 [shape = 'u8[4096]{0}', space=vmem, size = 0x1000, scoped, tag = 'input window, operand 2']
    #allocation7 [shape = 's32[2]{0}', space=sflag, size = 0x8, scoped, tag = 'scoped memory for tpu_custom_call.1']
    #allocation8 [shape = 'u8[32768]{0}', space=vmem, size = 0x8000, scoped, tag = 'input window, operand 3, single buffered']
    #allocation9 [shape = 'u8[32768]{0}', space=vmem, size = 0x8000, scoped, tag = 'input window, operand 5, single buffered']
    #allocation10 [shape = 's32[1]{0}', space=sflag, size = 0x4, scoped, tag = 'scoped memory for tpu_custom_call.1']
    #allocation11 [shape = 'u8[65536]{0}', space=vmem, size = 0x10000, scoped, tag = 'input window, operand 7, single buffered']
    #allocation12 [shape = 'u8[32768]{0}', space=vmem, size = 0x8000, scoped, tag = 'input window, operand 9, single buffered']
    #allocation13 [shape = 's32[1]{0}', space=sflag, size = 0x4, scoped, tag = 'scoped memory for tpu_custom_call.1']
    #allocation14 [shape = 'u8[32768]{0}', space=vmem, size = 0x8000, scoped, tag = 'input window, operand 10, single buffered']
    #allocation15 [shape = 'u8[32768]{0}', space=vmem, size = 0x8000, scoped, tag = 'input window, operand 12, single buffered']
    #allocation16 [shape = 's32[1]{0}', space=sflag, size = 0x4, scoped, tag = 'scoped memory for tpu_custom_call.1']
    #allocation17 [shape = 'u8[32768]{0}', space=vmem, size = 0x8000, scoped, tag = 'input window, operand 14, single buffered']
    #allocation18 [shape = 'u8[8192]{0}', space=vmem, size = 0x2000, scoped, tag = 'output window, operand 0']
    #allocation19 [shape = 'u8[8192]{0}', space=vmem, size = 0x2000, scoped, tag = 'output window, operand 1']
    #allocation20 [shape = 's32[2]{0}', space=sflag, size = 0x8, scoped, tag = 'scoped memory for tpu_custom_call.1']
    #allocation21 [shape = 'u8[8192]{0}', space=vmem, size = 0x2000, scoped, tag = 'output window, operand 2']
    %25 = vsyncpa [#allocation4], 0
    %s26 = scalar_lea.sflag [#allocation4], 1
    %27 = vsyncpa %s26, 0
    %28 = vsyncpa [#allocation7], 0
    %s29 = scalar_lea.sflag [#allocation7], 1
    %30 = vsyncpa %s29, 0
    %31 = vsyncpa [#allocation10], 0
    %32 = vsyncpa [#allocation13], 0
    %33 = vsyncpa [#allocation16], 0
    %34 = vsyncpa [#allocation5], 0
    %s35 = scalar_lea.sflag [#allocation5], 1
    %36 = vsyncpa %s35, 0
    %37 = vsyncpa [#allocation20], 0
    %s38 = scalar_lea.sflag [#allocation20], 1
    %39 = vsyncpa %s38, 0
    loop: start=0, step=1, limit=4
    $region2: #{tpu_custom_call.1} parent=1 // loop_pre_header
      _
    $region3: #{tpu_custom_call.1} parent=1 // loop_header
      %s41 = sphi 0, %s45
      %p42 = scmp.ge.s32.totalorder %s41, 4
      %s49 = sphi 0, %s49
      %s51 = sphi 0, %s49
      %s52 = sphi 0, %s51
      %s66 = sphi 0, %s52
      %s72 = sphi 0, %s74
      %s75 = sphi 0, %s72
      %s76 = sphi 0, %s75
      %s92 = sphi 0, %s76
      %s98 = sphi 0, %s100
      %s101 = sphi 0, %s98
      %s102 = sphi 0, %s101
      %s118 = sphi 0, %s102
      %s122 = sphi 0, %s122
      %s124 = sphi 0, %s122
      %s125 = sphi 0, %s124
      %s139 = sphi 0, %s125
      %s143 = sphi 0, %s143
      %s145 = sphi 0, %s143
      %s146 = sphi 0, %s145
      %s160 = sphi 0, %s146
      %s164 = sphi 0, %s164
      %s166 = sphi 0, %s164
      %s167 = sphi 0, %s166
      %s181 = sphi 0, %s167
      %s185 = sphi 0, %s185
      %s187 = sphi 0, %s185
      %s188 = sphi 0, %s187
      %s202 = sphi 0, %s188
      %s206 = sphi 0, %s206
      %s208 = sphi 0, %s206
      %s209 = sphi 0, %s208
      %s223 = sphi 0, %s209
      %s227 = sphi 0, %s227
      %s229 = sphi 0, %s227
      %s230 = sphi 0, %s229
      %s244 = sphi 0, %s230
      %s248 = sphi 0, %s248
      %s250 = sphi 0, %s248
      %s251 = sphi 0, %s250
      %s265 = sphi 0, %s251
      %s269 = sphi 0, %s269
      %s271 = sphi 0, %s269
      %s272 = sphi 0, %s271
      %s286 = sphi 0, %s272
      %s290 = sphi 0, %s290
      %s292 = sphi 0, %s290
      %s293 = sphi 0, %s292
      %s307 = sphi 0, %s293
      %s311 = sphi 0, %s311
      %s313 = sphi 0, %s311
      %s314 = sphi 0, %s313
      %s328 = sphi 0, %s314
      %s332 = sphi 0, %s332
      %s334 = sphi 0, %s332
      %s335 = sphi 0, %s334
      %s349 = sphi 0, %s335
      %s353 = sphi 0, %s353
      %s355 = sphi 0, %s353
      %s356 = sphi 0, %s355
      %s370 = sphi 0, %s356
      %s374 = sphi 0, %s374
      %s376 = sphi 0, %s374
      %s377 = sphi 0, %s376
      %s391 = sphi 0, %s377
      %s397 = sphi 0, %s399
      %s400 = sphi 0, %s397
      %s401 = sphi 0, %s400
      %s417 = sphi 0, %s401
      %s423 = sphi 0, %s425
      %s426 = sphi 0, %s423
      %s427 = sphi 0, %s426
      %s443 = sphi 0, %s427
      %s449 = sphi 0, %s451
      %s452 = sphi 0, %s449
      %s453 = sphi 0, %s452
      %s469 = sphi 0, %s453
    $region4: #{tpu_custom_call.1} parent=1 // loop_header_branch
      %44 = sbr.rel (%p42) target = $region8
    $region5: #{tpu_custom_call.1} parent=1 // loop_body
      %s46 = ssub.s32 %s41, 1
      %s47 = ssub.s32 %s41, 2
      %s48 = sadd.s32 %s41, 1
      %s50 = sadd.s32 %s49, 1
      %p53 = scmp.eq.s32.totalorder %s41, 1
      %p54 = scmp.ne.s32.totalorder %s49, %s51
      %p55 = scmp.eq.s32.totalorder %s41, 0
      %p56 = por %p54, %p55
      %p57 = scmp.ne.s32.totalorder %s49, %s51
      %p58 = scmp.eq.s32.totalorder %s46, 1
      %p59 = por %p57, %p58
      %p60 = scmp.ne.s32.totalorder %s51, %s52
      %p61 = scmp.eq.s32.totalorder %s46, 0
      %p62 = por %p60, %p61
      %p63 = scmp.ne.s32.totalorder %s51, %s52
      %p64 = scmp.eq.s32.totalorder %s47, 1
      %p65 = por %p63, %p64
      %p67 = scmp.ne.s32.totalorder %s52, %s66
      %p68 = scmp.eq.s32.totalorder %s47, 0
      %p69 = por %p67, %p68
      %s70 = ssub.s32 %s41, %s48
      %p71 = scmp.eq.s32.totalorder %s70, 0
      %s73 = sadd.s32 %s72, 1
      %s74 = scalar_select %p71, %s72, %s73
      %p77 = pneg %p71
      %p78 = scmp.eq.s32.totalorder %s41, 1
      %p79 = por %p77, %p78
      %p80 = scmp.ne.s32.totalorder %s72, %s75
      %p81 = scmp.eq.s32.totalorder %s41, 0
      %p82 = por %p80, %p81
      %p83 = scmp.ne.s32.totalorder %s72, %s75
      %p84 = scmp.eq.s32.totalorder %s46, 1
      %p85 = por %p83, %p84
      %p86 = scmp.ne.s32.totalorder %s75, %s76
      %p87 = scmp.eq.s32.totalorder %s46, 0
      %p88 = por %p86, %p87
      %p89 = scmp.ne.s32.totalorder %s75, %s76
      %p90 = scmp.eq.s32.totalorder %s47, 1
      %p91 = por %p89, %p90
      %p93 = scmp.ne.s32.totalorder %s76, %s92
      %p94 = scmp.eq.s32.totalorder %s47, 0
      %p95 = por %p93, %p94
      %s96 = ssub.s32 %s41, %s48
      %p97 = scmp.eq.s32.totalorder %s96, 0
      %s99 = sadd.s32 %s98, 1
      %s100 = scalar_select %p97, %s98, %s99
      %p103 = pneg %p97
      %p104 = scmp.eq.s32.totalorder %s41, 1
      %p105 = por %p103, %p104
      %p106 = scmp.ne.s32.totalorder %s98, %s101
      %p107 = scmp.eq.s32.totalorder %s41, 0
      %p108 = por %p106, %p107
      %p109 = scmp.ne.s32.totalorder %s98, %s101
      %p110 = scmp.eq.s32.totalorder %s46, 1
      %p111 = por %p109, %p110
      %p112 = scmp.ne.s32.totalorder %s101, %s102
      %p113 = scmp.eq.s32.totalorder %s46, 0
      %p114 = por %p112, %p113
      %p115 = scmp.ne.s32.totalorder %s101, %s102
      %p116 = scmp.eq.s32.totalorder %s47, 1
      %p117 = por %p115, %p116
      %p119 = scmp.ne.s32.totalorder %s102, %s118
      %p120 = scmp.eq.s32.totalorder %s47, 0
      %p121 = por %p119, %p120
      %s123 = sadd.s32 %s122, 1
      %p126 = scmp.eq.s32.totalorder %s41, 1
      %p127 = scmp.ne.s32.totalorder %s122, %s124
      %p128 = scmp.eq.s32.totalorder %s41, 0
      %p129 = por %p127, %p128
      %p130 = scmp.ne.s32.totalorder %s122, %s124
      %p131 = scmp.eq.s32.totalorder %s46, 1
      %p132 = por %p130, %p131
      %p133 = scmp.ne.s32.totalorder %s124, %s125
      %p134 = scmp.eq.s32.totalorder %s46, 0
      %p135 = por %p133, %p134
      %p136 = scmp.ne.s32.totalorder %s124, %s125
      %p137 = scmp.eq.s32.totalorder %s47, 1
      %p138 = por %p136, %p137
      %p140 = scmp.ne.s32.totalorder %s125, %s139
      %p141 = scmp.eq.s32.totalorder %s47, 0
      %p142 = por %p140, %p141
      %s144 = sadd.s32 %s143, 1
      %p147 = scmp.eq.s32.totalorder %s41, 1
      %p148 = scmp.ne.s32.totalorder %s143, %s145
      %p149 = scmp.eq.s32.totalorder %s41, 0
      %p150 = por %p148, %p149
      %p151 = scmp.ne.s32.totalorder %s143, %s145
      %p152 = scmp.eq.s32.totalorder %s46, 1
      %p153 = por %p151, %p152
      %p154 = scmp.ne.s32.totalorder %s145, %s146
      %p155 = scmp.eq.s32.totalorder %s46, 0
      %p156 = por %p154, %p155
      %p157 = scmp.ne.s32.totalorder %s145, %s146
      %p158 = scmp.eq.s32.totalorder %s47, 1
      %p159 = por %p157, %p158
      %p161 = scmp.ne.s32.totalorder %s146, %s160
      %p162 = scmp.eq.s32.totalorder %s47, 0
      %p163 = por %p161, %p162
      %s165 = sadd.s32 %s164, 1
      %p168 = scmp.eq.s32.totalorder %s41, 1
      %p169 = scmp.ne.s32.totalorder %s164, %s166
      %p170 = scmp.eq.s32.totalorder %s41, 0
      %p171 = por %p169, %p170
      %p172 = scmp.ne.s32.totalorder %s164, %s166
      %p173 = scmp.eq.s32.totalorder %s46, 1
      %p174 = por %p172, %p173
      %p175 = scmp.ne.s32.totalorder %s166, %s167
      %p176 = scmp.eq.s32.totalorder %s46, 0
      %p177 = por %p175, %p176
      %p178 = scmp.ne.s32.totalorder %s166, %s167
      %p179 = scmp.eq.s32.totalorder %s47, 1
      %p180 = por %p178, %p179
      %p182 = scmp.ne.s32.totalorder %s167, %s181
      %p183 = scmp.eq.s32.totalorder %s47, 0
      %p184 = por %p182, %p183
      %s186 = sadd.s32 %s185, 1
      %p189 = scmp.eq.s32.totalorder %s41, 1
      %p190 = scmp.ne.s32.totalorder %s185, %s187
      %p191 = scmp.eq.s32.totalorder %s41, 0
      %p192 = por %p190, %p191
      %p193 = scmp.ne.s32.totalorder %s185, %s187
      %p194 = scmp.eq.s32.totalorder %s46, 1
      %p195 = por %p193, %p194
      %p196 = scmp.ne.s32.totalorder %s187, %s188
      %p197 = scmp.eq.s32.totalorder %s46, 0
      %p198 = por %p196, %p197
      %p199 = scmp.ne.s32.totalorder %s187, %s188
      %p200 = scmp.eq.s32.totalorder %s47, 1
      %p201 = por %p199, %p200
      %p203 = scmp.ne.s32.totalorder %s188, %s202
      %p204 = scmp.eq.s32.totalorder %s47, 0
      %p205 = por %p203, %p204
      %s207 = sadd.s32 %s206, 1
      %p210 = scmp.eq.s32.totalorder %s41, 1
      %p211 = scmp.ne.s32.totalorder %s206, %s208
      %p212 = scmp.eq.s32.totalorder %s41, 0
      %p213 = por %p211, %p212
      %p214 = scmp.ne.s32.totalorder %s206, %s208
      %p215 = scmp.eq.s32.totalorder %s46, 1
      %p216 = por %p214, %p215
      %p217 = scmp.ne.s32.totalorder %s208, %s209
      %p218 = scmp.eq.s32.totalorder %s46, 0
      %p219 = por %p217, %p218
      %p220 = scmp.ne.s32.totalorder %s208, %s209
      %p221 = scmp.eq.s32.totalorder %s47, 1
      %p222 = por %p220, %p221
      %p224 = scmp.ne.s32.totalorder %s209, %s223
      %p225 = scmp.eq.s32.totalorder %s47, 0
      %p226 = por %p224, %p225
      %s228 = sadd.s32 %s227, 1
      %p231 = scmp.eq.s32.totalorder %s41, 1
      %p232 = scmp.ne.s32.totalorder %s227, %s229
      %p233 = scmp.eq.s32.totalorder %s41, 0
      %p234 = por %p232, %p233
      %p235 = scmp.ne.s32.totalorder %s227, %s229
      %p236 = scmp.eq.s32.totalorder %s46, 1
      %p237 = por %p235, %p236
      %p238 = scmp.ne.s32.totalorder %s229, %s230
      %p239 = scmp.eq.s32.totalorder %s46, 0
      %p240 = por %p238, %p239
      %p241 = scmp.ne.s32.totalorder %s229, %s230
      %p242 = scmp.eq.s32.totalorder %s47, 1
      %p243 = por %p241, %p242
      %p245 = scmp.ne.s32.totalorder %s230, %s244
      %p246 = scmp.eq.s32.totalorder %s47, 0
      %p247 = por %p245, %p246
      %s249 = sadd.s32 %s248, 1
      %p252 = scmp.eq.s32.totalorder %s41, 1
      %p253 = scmp.ne.s32.totalorder %s248, %s250
      %p254 = scmp.eq.s32.totalorder %s41, 0
      %p255 = por %p253, %p254
      %p256 = scmp.ne.s32.totalorder %s248, %s250
      %p257 = scmp.eq.s32.totalorder %s46, 1
      %p258 = por %p256, %p257
      %p259 = scmp.ne.s32.totalorder %s250, %s251
      %p260 = scmp.eq.s32.totalorder %s46, 0
      %p261 = por %p259, %p260
      %p262 = scmp.ne.s32.totalorder %s250, %s251
      %p263 = scmp.eq.s32.totalorder %s47, 1
      %p264 = por %p262, %p263
      %p266 = scmp.ne.s32.totalorder %s251, %s265
      %p267 = scmp.eq.s32.totalorder %s47, 0
      %p268 = por %p266, %p267
      %s270 = sadd.s32 %s269, 1
      %p273 = scmp.eq.s32.totalorder %s41, 1
      %p274 = scmp.ne.s32.totalorder %s269, %s271
      %p275 = scmp.eq.s32.totalorder %s41, 0
      %p276 = por %p274, %p275
      %p277 = scmp.ne.s32.totalorder %s269, %s271
      %p278 = scmp.eq.s32.totalorder %s46, 1
      %p279 = por %p277, %p278
      %p280 = scmp.ne.s32.totalorder %s271, %s272
      %p281 = scmp.eq.s32.totalorder %s46, 0
      %p282 = por %p280, %p281
      %p283 = scmp.ne.s32.totalorder %s271, %s272
      %p284 = scmp.eq.s32.totalorder %s47, 1
      %p285 = por %p283, %p284
      %p287 = scmp.ne.s32.totalorder %s272, %s286
      %p288 = scmp.eq.s32.totalorder %s47, 0
      %p289 = por %p287, %p288
      %s291 = sadd.s32 %s290, 1
      %p294 = scmp.eq.s32.totalorder %s41, 1
      %p295 = scmp.ne.s32.totalorder %s290, %s292
      %p296 = scmp.eq.s32.totalorder %s41, 0
      %p297 = por %p295, %p296
      %p298 = scmp.ne.s32.totalorder %s290, %s292
      %p299 = scmp.eq.s32.totalorder %s46, 1
      %p300 = por %p298, %p299
      %p301 = scmp.ne.s32.totalorder %s292, %s293
      %p302 = scmp.eq.s32.totalorder %s46, 0
      %p303 = por %p301, %p302
      %p304 = scmp.ne.s32.totalorder %s292, %s293
      %p305 = scmp.eq.s32.totalorder %s47, 1
      %p306 = por %p304, %p305
      %p308 = scmp.ne.s32.totalorder %s293, %s307
      %p309 = scmp.eq.s32.totalorder %s47, 0
      %p310 = por %p308, %p309
      %s312 = sadd.s32 %s311, 1
      %p315 = scmp.eq.s32.totalorder %s41, 1
      %p316 = scmp.ne.s32.totalorder %s311, %s313
      %p317 = scmp.eq.s32.totalorder %s41, 0
      %p318 = por %p316, %p317
      %p319 = scmp.ne.s32.totalorder %s311, %s313
      %p320 = scmp.eq.s32.totalorder %s46, 1
      %p321 = por %p319, %p320
      %p322 = scmp.ne.s32.totalorder %s313, %s314
      %p323 = scmp.eq.s32.totalorder %s46, 0
      %p324 = por %p322, %p323
      %p325 = scmp.ne.s32.totalorder %s313, %s314
      %p326 = scmp.eq.s32.totalorder %s47, 1
      %p327 = por %p325, %p326
      %p329 = scmp.ne.s32.totalorder %s314, %s328
      %p330 = scmp.eq.s32.totalorder %s47, 0
      %p331 = por %p329, %p330
      %s333 = sadd.s32 %s332, 1
      %p336 = scmp.eq.s32.totalorder %s41, 1
      %p337 = scmp.ne.s32.totalorder %s332, %s334
      %p338 = scmp.eq.s32.totalorder %s41, 0
      %p339 = por %p337, %p338
      %p340 = scmp.ne.s32.totalorder %s332, %s334
      %p341 = scmp.eq.s32.totalorder %s46, 1
      %p342 = por %p340, %p341
      %p343 = scmp.ne.s32.totalorder %s334, %s335
      %p344 = scmp.eq.s32.totalorder %s46, 0
      %p345 = por %p343, %p344
      %p346 = scmp.ne.s32.totalorder %s334, %s335
      %p347 = scmp.eq.s32.totalorder %s47, 1
      %p348 = por %p346, %p347
      %p350 = scmp.ne.s32.totalorder %s335, %s349
      %p351 = scmp.eq.s32.totalorder %s47, 0
      %p352 = por %p350, %p351
      %s354 = sadd.s32 %s353, 1
      %p357 = scmp.eq.s32.totalorder %s41, 1
      %p358 = scmp.ne.s32.totalorder %s353, %s355
      %p359 = scmp.eq.s32.totalorder %s41, 0
      %p360 = por %p358, %p359
      %p361 = scmp.ne.s32.totalorder %s353, %s355
      %p362 = scmp.eq.s32.totalorder %s46, 1
      %p363 = por %p361, %p362
      %p364 = scmp.ne.s32.totalorder %s355, %s356
      %p365 = scmp.eq.s32.totalorder %s46, 0
      %p366 = por %p364, %p365
      %p367 = scmp.ne.s32.totalorder %s355, %s356
      %p368 = scmp.eq.s32.totalorder %s47, 1
      %p369 = por %p367, %p368
      %p371 = scmp.ne.s32.totalorder %s356, %s370
      %p372 = scmp.eq.s32.totalorder %s47, 0
      %p373 = por %p371, %p372
      %s375 = sadd.s32 %s374, 1
      %p378 = scmp.eq.s32.totalorder %s41, 1
      %p379 = scmp.ne.s32.totalorder %s374, %s376
      %p380 = scmp.eq.s32.totalorder %s41, 0
      %p381 = por %p379, %p380
      %p382 = scmp.ne.s32.totalorder %s374, %s376
      %p383 = scmp.eq.s32.totalorder %s46, 1
      %p384 = por %p382, %p383
      %p385 = scmp.ne.s32.totalorder %s376, %s377
      %p386 = scmp.eq.s32.totalorder %s46, 0
      %p387 = por %p385, %p386
      %p388 = scmp.ne.s32.totalorder %s376, %s377
      %p389 = scmp.eq.s32.totalorder %s47, 1
      %p390 = por %p388, %p389
      %p392 = scmp.ne.s32.totalorder %s377, %s391
      %p393 = scmp.eq.s32.totalorder %s47, 0
      %p394 = por %p392, %p393
      %s395 = ssub.s32 %s41, %s48
      %p396 = scmp.eq.s32.totalorder %s395, 0
      %s398 = sadd.s32 %s397, 1
      %s399 = scalar_select %p396, %s397, %s398
      %p402 = pneg %p396
      %p403 = scmp.eq.s32.totalorder %s41, 1
      %p404 = por %p402, %p403
      %p405 = scmp.ne.s32.totalorder %s397, %s400
      %p406 = scmp.eq.s32.totalorder %s41, 0
      %p407 = por %p405, %p406
      %p408 = scmp.ne.s32.totalorder %s397, %s400
      %p409 = scmp.eq.s32.totalorder %s46, 1
      %p410 = por %p408, %p409
      %p411 = scmp.ne.s32.totalorder %s400, %s401
      %p412 = scmp.eq.s32.totalorder %s46, 0
      %p413 = por %p411, %p412
      %p414 = scmp.ne.s32.totalorder %s400, %s401
      %p415 = scmp.eq.s32.totalorder %s47, 1
      %p416 = por %p414, %p415
      %p418 = scmp.ne.s32.totalorder %s401, %s417
      %p419 = scmp.eq.s32.totalorder %s47, 0
      %p420 = por %p418, %p419
      %s421 = ssub.s32 %s41, %s48
      %p422 = scmp.eq.s32.totalorder %s421, 0
      %s424 = sadd.s32 %s423, 1
      %s425 = scalar_select %p422, %s423, %s424
      %p428 = pneg %p422
      %p429 = scmp.eq.s32.totalorder %s41, 1
      %p430 = por %p428, %p429
      %p431 = scmp.ne.s32.totalorder %s423, %s426
      %p432 = scmp.eq.s32.totalorder %s41, 0
      %p433 = por %p431, %p432
      %p434 = scmp.ne.s32.totalorder %s423, %s426
      %p435 = scmp.eq.s32.totalorder %s46, 1
      %p436 = por %p434, %p435
      %p437 = scmp.ne.s32.totalorder %s426, %s427
      %p438 = scmp.eq.s32.totalorder %s46, 0
      %p439 = por %p437, %p438
      %p440 = scmp.ne.s32.totalorder %s426, %s427
      %p441 = scmp.eq.s32.totalorder %s47, 1
      %p442 = por %p440, %p441
      %p444 = scmp.ne.s32.totalorder %s427, %s443
      %p445 = scmp.eq.s32.totalorder %s47, 0
      %p446 = por %p444, %p445
      %s447 = ssub.s32 %s41, %s48
      %p448 = scmp.eq.s32.totalorder %s447, 0
      %s450 = sadd.s32 %s449, 1
      %s451 = scalar_select %p448, %s449, %s450
      %p454 = pneg %p448
      %p455 = scmp.eq.s32.totalorder %s41, 1
      %p456 = por %p454, %p455
      %p457 = scmp.ne.s32.totalorder %s449, %s452
      %p458 = scmp.eq.s32.totalorder %s41, 0
      %p459 = por %p457, %p458
      %p460 = scmp.ne.s32.totalorder %s449, %s452
      %p461 = scmp.eq.s32.totalorder %s46, 1
      %p462 = por %p460, %p461
      %p463 = scmp.ne.s32.totalorder %s452, %s453
      %p464 = scmp.eq.s32.totalorder %s46, 0
      %p465 = por %p463, %p464
      %p466 = scmp.ne.s32.totalorder %s452, %s453
      %p467 = scmp.eq.s32.totalorder %s47, 1
      %p468 = por %p466, %p467
      %p470 = scmp.ne.s32.totalorder %s453, %s469
      %p471 = scmp.eq.s32.totalorder %s47, 0
      %p472 = por %p470, %p471
      %p473 = scmp.le.s32.totalorder 1, %s41
      %p474 = scmp.lt.s32.totalorder %s41, 3
      %p475 = pnand %p473, %p474
      %p476 = pneg %p475
      // Predicated region
      $region9: #{tpu_custom_call.1} parent=5 // pred_check
        _
      $region10: #{tpu_custom_call.1} parent=5 // pred_check_branch
        %478 = sbr.rel (%p475) target = $region12
      $region11: #{tpu_custom_call.1} parent=5 // pred_region
        %s479 = ssub.s32 %s41, 1
        // Predicated region
        $region13: #{tpu_custom_call.1} parent=11 // pred_check
          %p480 = pneg %p62
        $region14: #{tpu_custom_call.1} parent=11 // pred_check_branch
          %482 = sbr.rel (%p480) target = $region16
        $region15: #{tpu_custom_call.1} parent=11 // pred_region
          _
        $region16: #{tpu_custom_call.1} parent=11 // pred_fallthru
          _
        // Predicated region
        $region17: #{tpu_custom_call.1} parent=11 // pred_check
          %p483 = pneg %p135
        $region18: #{tpu_custom_call.1} parent=11 // pred_check_branch
          %485 = sbr.rel (%p483) target = $region20
        $region19: #{tpu_custom_call.1} parent=11 // pred_region
          %s487 = ssub.s32 1024, 1024
          %488 = vsyncadd [#allocation7], %s487
          %s489 = sshll.u32 [#allocation8], 4
          %s490 = int_to_ptr.vmem [resolvable:$true] %s489
          %495 = dma.hbm_to_vmem [thread:$0]  %s3, 1024, %s490, [#allocation7], 64, 64, 4
        $region20: #{tpu_custom_call.1} parent=11 // pred_fallthru
          _
        // Predicated region
        $region21: #{tpu_custom_call.1} parent=11 // pred_check
          %p496 = pneg %p156
        $region22: #{tpu_custom_call.1} parent=11 // pred_check_branch
          %498 = sbr.rel (%p496) target = $region24
        $region23: #{tpu_custom_call.1} parent=11 // pred_region
          _
        $region24: #{tpu_custom_call.1} parent=11 // pred_fallthru
          _
        // Predicated region
        $region25: #{tpu_custom_call.1} parent=11 // pred_check
          %p499 = pneg %p177
        $region26: #{tpu_custom_call.1} parent=11 // pred_check_branch
          %501 = sbr.rel (%p499) target = $region28
        $region27: #{tpu_custom_call.1} parent=11 // pred_region
          %s503 = ssub.s32 1024, 1024
          %504 = vsyncadd [#allocation10], %s503
          %s505 = sshll.u32 [#allocation9], 4
          %s506 = int_to_ptr.vmem [resolvable:$true] %s505
          %511 = dma.hbm_to_vmem [thread:$0]  %s5, 1024, %s506, [#allocation10], 64, 64, 4
        $region28: #{tpu_custom_call.1} parent=11 // pred_fallthru
          _
        // Predicated region
        $region29: #{tpu_custom_call.1} parent=11 // pred_check
          %p512 = pneg %p198
        $region30: #{tpu_custom_call.1} parent=11 // pred_check_branch
          %514 = sbr.rel (%p512) target = $region32
        $region31: #{tpu_custom_call.1} parent=11 // pred_region
          _
        $region32: #{tpu_custom_call.1} parent=11 // pred_fallthru
          _
        // Predicated region
        $region33: #{tpu_custom_call.1} parent=11 // pred_check
          %p515 = pneg %p219
        $region34: #{tpu_custom_call.1} parent=11 // pred_check_branch
          %517 = sbr.rel (%p515) target = $region36
        $region35: #{tpu_custom_call.1} parent=11 // pred_region
          %s519 = ssub.s32 2048, 2048
          %520 = vsyncadd [#allocation10], %s519
          %s521 = sshll.u32 [#allocation11], 4
          %s522 = int_to_ptr.vmem [resolvable:$true] %s521
          %527 = dma.hbm_to_vmem [thread:$0]  %s7, 2048, %s522, [#allocation10], 128, 128, 8
        $region36: #{tpu_custom_call.1} parent=11 // pred_fallthru
          _
        // Predicated region
        $region37: #{tpu_custom_call.1} parent=11 // pred_check
          %p528 = pneg %p240
        $region38: #{tpu_custom_call.1} parent=11 // pred_check_branch
          %530 = sbr.rel (%p528) target = $region40
        $region39: #{tpu_custom_call.1} parent=11 // pred_region
          _
        $region40: #{tpu_custom_call.1} parent=11 // pred_fallthru
          _
        // Predicated region
        $region41: #{tpu_custom_call.1} parent=11 // pred_check
          %p531 = pneg %p261
        $region42: #{tpu_custom_call.1} parent=11 // pred_check_branch
          %533 = sbr.rel (%p531) target = $region44
        $region43: #{tpu_custom_call.1} parent=11 // pred_region
          %s535 = ssub.s32 1024, 1024
          %536 = vsyncadd [#allocation13], %s535
          %s537 = sshll.u32 [#allocation12], 4
          %s538 = int_to_ptr.vmem [resolvable:$true] %s537
          %543 = dma.hbm_to_vmem [thread:$0]  %s9, 1024, %s538, [#allocation13], 64, 64, 4
        $region44: #{tpu_custom_call.1} parent=11 // pred_fallthru
          _
        // Predicated region
        $region45: #{tpu_custom_call.1} parent=11 // pred_check
          %p544 = pneg %p282
        $region46: #{tpu_custom_call.1} parent=11 // pred_check_branch
          %546 = sbr.rel (%p544) target = $region48
        $region47: #{tpu_custom_call.1} parent=11 // pred_region
          %s548 = ssub.s32 1024, 1024
          %549 = vsyncadd [#allocation13], %s548
          %s550 = sshll.u32 [#allocation14], 4
          %s551 = int_to_ptr.vmem [resolvable:$true] %s550
          %556 = dma.hbm_to_vmem [thread:$0]  %s10, 1024, %s551, [#allocation13], 64, 64, 4
        $region48: #{tpu_custom_call.1} parent=11 // pred_fallthru
          _
        // Predicated region
        $region49: #{tpu_custom_call.1} parent=11 // pred_check
          %p557 = pneg %p303
        $region50: #{tpu_custom_call.1} parent=11 // pred_check_branch
          %559 = sbr.rel (%p557) target = $region52
        $region51: #{tpu_custom_call.1} parent=11 // pred_region
          _
        $region52: #{tpu_custom_call.1} parent=11 // pred_fallthru
          _
        // Predicated region
        $region53: #{tpu_custom_call.1} parent=11 // pred_check
          %p560 = pneg %p324
        $region54: #{tpu_custom_call.1} parent=11 // pred_check_branch
          %562 = sbr.rel (%p560) target = $region56
        $region55: #{tpu_custom_call.1} parent=11 // pred_region
          %s564 = ssub.s32 1024, 1024
          %565 = vsyncadd [#allocation16], %s564
          %s566 = sshll.u32 [#allocation15], 4
          %s567 = int_to_ptr.vmem [resolvable:$true] %s566
          %572 = dma.hbm_to_vmem [thread:$0]  %s12, 1024, %s567, [#allocation16], 64, 64, 4
        $region56: #{tpu_custom_call.1} parent=11 // pred_fallthru
          _
        // Predicated region
        $region57: #{tpu_custom_call.1} parent=11 // pred_check
          %p573 = pneg %p345
        $region58: #{tpu_custom_call.1} parent=11 // pred_check_branch
          %575 = sbr.rel (%p573) target = $region60
        $region59: #{tpu_custom_call.1} parent=11 // pred_region
          _
        $region60: #{tpu_custom_call.1} parent=11 // pred_fallthru
          _
        // Predicated region
        $region61: #{tpu_custom_call.1} parent=11 // pred_check
          %p576 = pneg %p366
        $region62: #{tpu_custom_call.1} parent=11 // pred_check_branch
          %578 = sbr.rel (%p576) target = $region64
        $region63: #{tpu_custom_call.1} parent=11 // pred_region
          %s580 = ssub.s32 1024, 1024
          %581 = vsyncadd [#allocation16], %s580
          %s582 = sshll.u32 [#allocation17], 4
          %s583 = int_to_ptr.vmem [resolvable:$true] %s582
          %588 = dma.hbm_to_vmem [thread:$0]  %s14, 1024, %s583, [#allocation16], 64, 64, 4
        $region64: #{tpu_custom_call.1} parent=11 // pred_fallthru
          _
        // Predicated region
        $region65: #{tpu_custom_call.1} parent=11 // pred_check
          %p589 = pneg %p387
        $region66: #{tpu_custom_call.1} parent=11 // pred_check_branch
          %591 = sbr.rel (%p589) target = $region68
        $region67: #{tpu_custom_call.1} parent=11 // pred_region
          _
        $region68: #{tpu_custom_call.1} parent=11 // pred_fallthru
          _
      $region12: #{tpu_custom_call.1} parent=5 // pred_fallthru
        _
      %p592 = scmp.lt.s32.totalorder %s41, 2
      // Predicated region
      $region69: #{tpu_custom_call.1} parent=5 // pred_check
        %p593 = pneg %p592
      $region70: #{tpu_custom_call.1} parent=5 // pred_check_branch
        %595 = sbr.rel (%p593) target = $region72
      $region71: #{tpu_custom_call.1} parent=5 // pred_region
        // Predicated region
        $region73: #{tpu_custom_call.1} parent=71 // pred_check
          %p596 = pneg %p82
        $region74: #{tpu_custom_call.1} parent=71 // pred_check_branch
          %598 = sbr.rel (%p596) target = $region76
        $region75: #{tpu_custom_call.1} parent=71 // pred_region
          %s599 = sand.u32 %s72, 1
          %s600 = scalar_lea.sflag [#allocation4], %s599
          %s601 = sand.u32 %s72, 1
          %s602 = smul.addr %s601, 4
          %s603 = scalar_lea.vmem [#allocation3], %s602
          %s605 = ssub.s32 64, 64
          %606 = vsyncadd %s600, %s605
          %s607 = smul.addr %s41, 64
          %s608 = scalar_lea.hbm %s1, %s607
          %s610 = sshll.u32 %s603, 4
          %s611 = int_to_ptr.vmem [resolvable:$true] %s610
          %613 = dma.hbm_to_vmem [thread:$0]  %s608, 64, %s611, %s600
        $region76: #{tpu_custom_call.1} parent=71 // pred_fallthru
          _
        // Predicated region
        $region77: #{tpu_custom_call.1} parent=71 // pred_check
          %p614 = pneg %p108
        $region78: #{tpu_custom_call.1} parent=71 // pred_check_branch
          %616 = sbr.rel (%p614) target = $region80
        $region79: #{tpu_custom_call.1} parent=71 // pred_region
          %s617 = sand.u32 %s41, 1
          %s618 = scalar_lea.sflag [#allocation7], %s617
          %s619 = sand.u32 %s98, 1
          %s620 = smul.addr %s619, 4
          %s621 = scalar_lea.vmem [#allocation6], %s620
          %s623 = ssub.s32 64, 64
          %624 = vsyncadd %s618, %s623
          %s625 = smul.addr %s41, 64
          %s626 = scalar_lea.hbm %s2, %s625
          %s628 = sshll.u32 %s621, 4
          %s629 = int_to_ptr.vmem [resolvable:$true] %s628
          %631 = dma.hbm_to_vmem [thread:$0]  %s626, 64, %s629, %s618
        $region80: #{tpu_custom_call.1} parent=71 // pred_fallthru
          _
      $region72: #{tpu_custom_call.1} parent=5 // pred_fallthru
        _
      %p632 = scmp.le.s32.totalorder 1, %s41
      %p633 = scmp.lt.s32.totalorder %s41, 3
      %p634 = pnand %p632, %p633
      %p635 = pneg %p634
      // Predicated region
      $region81: #{tpu_custom_call.1} parent=5 // pred_check
        _
      $region82: #{tpu_custom_call.1} parent=5 // pred_check_branch
        %637 = sbr.rel (%p634) target = $region84
      $region83: #{tpu_custom_call.1} parent=5 // pred_region
        %s638 = ssub.s32 %s41, 1
        %s639 = sand.u32 %s75, 1
        %s640 = scalar_lea.sflag [#allocation4], %s639
        %s641 = sand.u32 %s75, 1
        %s642 = smul.addr %s641, 4
        %s643 = scalar_lea.vmem [#allocation3], %s642
        // Predicated region
        $region85: #{tpu_custom_call.1} parent=83 // pred_check
          %p644 = pneg %p88
        $region86: #{tpu_custom_call.1} parent=83 // pred_check_branch
          %646 = sbr.rel (%p644) target = $region88
        $region87: #{tpu_custom_call.1} parent=83 // pred_region
          %647 = dma.done %s640, 64
        $region88: #{tpu_custom_call.1} parent=83 // pred_fallthru
          _
        %s648 = sand.u32 %s46, 1
        %s649 = scalar_lea.sflag [#allocation7], %s648
        %s650 = sand.u32 %s101, 1
        %s651 = smul.addr %s650, 4
        %s652 = scalar_lea.vmem [#allocation6], %s651
        // Predicated region
        $region89: #{tpu_custom_call.1} parent=83 // pred_check
          %p653 = pneg %p114
        $region90: #{tpu_custom_call.1} parent=83 // pred_check_branch
          %655 = sbr.rel (%p653) target = $region92
        $region91: #{tpu_custom_call.1} parent=83 // pred_region
          %656 = dma.done %s649, 64
        $region92: #{tpu_custom_call.1} parent=83 // pred_fallthru
          _
        // Predicated region
        $region93: #{tpu_custom_call.1} parent=83 // pred_check
          %p657 = pneg %p135
        $region94: #{tpu_custom_call.1} parent=83 // pred_check_branch
          %659 = sbr.rel (%p657) target = $region96
        $region95: #{tpu_custom_call.1} parent=83 // pred_region
          %660 = dma.done [#allocation7], 1024
        $region96: #{tpu_custom_call.1} parent=83 // pred_fallthru
          _
        // Predicated region
        $region97: #{tpu_custom_call.1} parent=83 // pred_check
          %p661 = pneg %p177
        $region98: #{tpu_custom_call.1} parent=83 // pred_check_branch
          %663 = sbr.rel (%p661) target = $region100
        $region99: #{tpu_custom_call.1} parent=83 // pred_region
          %664 = dma.done [#allocation10], 1024
        $region100: #{tpu_custom_call.1} parent=83 // pred_fallthru
          _
        // Predicated region
        $region101: #{tpu_custom_call.1} parent=83 // pred_check
          %p665 = pneg %p219
        $region102: #{tpu_custom_call.1} parent=83 // pred_check_branch
          %667 = sbr.rel (%p665) target = $region104
        $region103: #{tpu_custom_call.1} parent=83 // pred_region
          %668 = dma.done [#allocation10], 2048
        $region104: #{tpu_custom_call.1} parent=83 // pred_fallthru
          _
        // Predicated region
        $region105: #{tpu_custom_call.1} parent=83 // pred_check
          %p669 = pneg %p261
        $region106: #{tpu_custom_call.1} parent=83 // pred_check_branch
          %671 = sbr.rel (%p669) target = $region108
        $region107: #{tpu_custom_call.1} parent=83 // pred_region
          %672 = dma.done [#allocation13], 1024
        $region108: #{tpu_custom_call.1} parent=83 // pred_fallthru
          _
        // Predicated region
        $region109: #{tpu_custom_call.1} parent=83 // pred_check
          %p673 = pneg %p282
        $region110: #{tpu_custom_call.1} parent=83 // pred_check_branch
          %675 = sbr.rel (%p673) target = $region112
        $region111: #{tpu_custom_call.1} parent=83 // pred_region
          %676 = dma.done [#allocation13], 1024
        $region112: #{tpu_custom_call.1} parent=83 // pred_fallthru
          _
        // Predicated region
        $region113: #{tpu_custom_call.1} parent=83 // pred_check
          %p677 = pneg %p324
        $region114: #{tpu_custom_call.1} parent=83 // pred_check_branch
          %679 = sbr.rel (%p677) target = $region116
        $region115: #{tpu_custom_call.1} parent=83 // pred_region
          %680 = dma.done [#allocation16], 1024
        $region116: #{tpu_custom_call.1} parent=83 // pred_fallthru
          _
        // Predicated region
        $region117: #{tpu_custom_call.1} parent=83 // pred_check
          %p681 = pneg %p366
        $region118: #{tpu_custom_call.1} parent=83 // pred_check_branch
          %683 = sbr.rel (%p681) target = $region120
        $region119: #{tpu_custom_call.1} parent=83 // pred_region
          %684 = dma.done [#allocation16], 1024
        $region120: #{tpu_custom_call.1} parent=83 // pred_fallthru
          _
        %p685 = pneg %p62
        %p686 = pneg %p59
        %s687 = sand.u32 %s75, 1
        %s688 = scalar_lea.sflag [#allocation4], %s687
        %s689 = sand.u32 %s75, 1
        %s690 = smul.addr %s689, 4
        %s691 = scalar_lea.vmem [#allocation3], %s690
        %p692 = pneg %p88
        %p693 = pneg %p85
        %s694 = sand.u32 %s46, 1
        %s695 = scalar_lea.sflag [#allocation7], %s694
        %s696 = sand.u32 %s101, 1
        %s697 = smul.addr %s696, 4
        %s698 = scalar_lea.vmem [#allocation6], %s697
        %p699 = pneg %p114
        %p700 = pneg %p111
        %p701 = pneg %p135
        %p702 = pneg %p132
        %p703 = pneg %p156
        %p704 = pneg %p153
        %p705 = pneg %p177
        %p706 = pneg %p174
        %p707 = pneg %p198
        %p708 = pneg %p195
        %p709 = pneg %p219
        %p710 = pneg %p216
        %p711 = pneg %p240
        %p712 = pneg %p237
        %p713 = pneg %p261
        %p714 = pneg %p258
        %p715 = pneg %p282
        %p716 = pneg %p279
        %p717 = pneg %p303
        %p718 = pneg %p300
        %p719 = pneg %p324
        %p720 = pneg %p321
        %p721 = pneg %p345
        %p722 = pneg %p342
        %p723 = pneg %p366
        %p724 = pneg %p363
        %p725 = pneg %p387
        %p726 = pneg %p384
        %p727 = pneg %p413
        %p728 = pneg %p410
        %s729 = sand.u32 %s400, 1
        %s730 = scalar_lea.sflag [#allocation5], %s729
        %s731 = sand.u32 %s400, 1
        %s732 = smul.addr %s731, 8
        %s733 = scalar_lea.vmem [#allocation18], %s732
        %p734 = pneg %p439
        %p735 = pneg %p436
        %s736 = sand.u32 %s46, 1
        %s737 = scalar_lea.sflag [#allocation20], %s736
        %s738 = sand.u32 %s426, 1
        %s739 = smul.addr %s738, 8
        %s740 = scalar_lea.vmem [#allocation19], %s739
        %p741 = pneg %p465
        %p742 = pneg %p462
        %s743 = sand.u32 %s46, 1
        %s744 = scalar_lea.sflag [#allocation20], %s743
        %s745 = sand.u32 %s452, 1
        %s746 = smul.addr %s745, 8
        %s747 = scalar_lea.vmem [#allocation21], %s746
        %s749 = sld [smem:[#allocation2]]
        %v750 = vld [vmem:[%s643] sm:$0xf]
        %v751 = vld [vmem:[#allocation8] sm:$0xf]
        %v752 = vld [vmem:[#allocation8 + $0x4] sm:$0xf]
        %v753 = vld [vmem:[#allocation8 + $0x8] sm:$0xf]
        %v754 = vld [vmem:[#allocation8 + $0xc] sm:$0xf]
        %v755 = vld [vmem:[#allocation8 + $0x10] sm:$0xf]
        %v756 = vld [vmem:[#allocation8 + $0x14] sm:$0xf]
        %v757 = vld [vmem:[#allocation8 + $0x18] sm:$0xf]
        %v758 = vld [vmem:[#allocation8 + $0x1c] sm:$0xf]
        %v759 = vld [vmem:[#allocation8 + $0x20] sm:$0xf]
        %v760 = vld [vmem:[#allocation8 + $0x24] sm:$0xf]
        %v761 = vld [vmem:[#allocation8 + $0x28] sm:$0xf]
        %v762 = vld [vmem:[#allocation8 + $0x2c] sm:$0xf]
        %v763 = vld [vmem:[#allocation8 + $0x30] sm:$0xf]
        %v764 = vld [vmem:[#allocation8 + $0x34] sm:$0xf]
        %v765 = vld [vmem:[#allocation8 + $0x38] sm:$0xf]
        %v766 = vld [vmem:[#allocation8 + $0x3c] sm:$0xf]
        %v767 = vld [vmem:[%s4] sm:$0x1]
        %v769 = vlaneseq
        %v770 = vshrl.u32 %v769, 7
        %v771 = vsub.s32 0, %v770
        %v772 = vrot.slane %v767, %v771
        %v790 = vunpack.c.l.b16 %v751
        %v791 = vunpack.c.l.b16 %v752
        %v792 = vunpack.c.l.b16 %v753
        %v793 = vunpack.c.l.b16 %v754
        %v794 = vunpack.c.l.b16 %v755
        %v795 = vunpack.c.l.b16 %v756
        %v796 = vunpack.c.l.b16 %v757
        %v797 = vunpack.c.l.b16 %v758
        %v798 = vunpack.c.l.b16 %v759
        %v799 = vunpack.c.l.b16 %v760
        %v800 = vunpack.c.l.b16 %v761
        %v801 = vunpack.c.l.b16 %v762
        %v802 = vunpack.c.l.b16 %v763
        %v803 = vunpack.c.l.b16 %v764
        %v804 = vunpack.c.l.b16 %v765
        %v805 = vunpack.c.l.b16 %v766
        %v806 = vpack.c.b16 %v791, %v790
        %v807 = vpack.c.b16 %v793, %v792
        %v808 = vpack.c.b16 %v795, %v794
        %v809 = vpack.c.b16 %v797, %v796
        %v810 = vpack.c.b16 %v799, %v798
        %v811 = vpack.c.b16 %v801, %v800
        %v812 = vpack.c.b16 %v803, %v802
        %v813 = vpack.c.b16 %v805, %v804
        %822 = vmatprep.subr.bf16.mxu0 0
        %823 = vmatpush1.bf16.msra.mxu0 %v806
        %824 = vmatprep.subr.bf16.mxu0 0
        %825 = vmatpush1.bf16.msra.mxu0 %v807
        %826 = vmatprep.subr.bf16.mxu0 0
        %827 = vmatpush1.bf16.msra.mxu0 %v808
        %828 = vmatprep.subr.bf16.mxu0 0
        %829 = vmatpush1.bf16.msra.mxu0 %v809
        %830 = vmatprep.subr.bf16.mxu0 0
        %831 = vmatpush1.bf16.msra.mxu0 %v810
        %832 = vmatprep.subr.bf16.mxu0 0
        %833 = vmatpush1.bf16.msra.mxu0 %v811
        %834 = vmatprep.subr.bf16.mxu0 0
        %835 = vmatpush1.bf16.msra.mxu0 %v812
        %836 = vmatprep.subr.bf16.mxu0 0
        %837 = vmatpush1.bf16.msra.mxu0 %v813
        %838 = vmatprep.subr.bf16.mxu0 0
        %839 = vmatpush1.bf16.msra.mxu0 0
        %840 = vmatprep.subr.bf16.mxu0 0
        %841 = vmatpush1.bf16.msra.mxu0 0
        %842 = vmatprep.subr.bf16.mxu0 0
        %843 = vmatpush1.bf16.msra.mxu0 0
        %844 = vmatprep.subr.bf16.mxu0 0
        %845 = vmatpush1.bf16.msra.mxu0 0
        %846 = vmatprep.subr.bf16.mxu0 0
        %847 = vmatpush1.bf16.msra.mxu0 0
        %848 = vmatprep.subr.bf16.mxu0 0
        %849 = vmatpush1.bf16.msra.mxu0 0
        %850 = vmatprep.subr.bf16.mxu0 0
        %851 = vmatpush1.bf16.msra.mxu0 0
        %852 = vmatprep.subr.bf16.mxu0 0
        %853 = vmatpush1.bf16.msra.mxu0 0
        %854 = vmatprep.mubr.bf16.mxu0 0
        %855 = vmatmul.mubr.bf16.gmra.mrb[0].mxu0 %v750
        %v856 = vpop.f32.mrb[0].mxu0
        %v857 = vadd.f32 %v772, %v856
        %v858 = vpop.f32.mrb[0].mxu0
        %v859 = vpop.f32.mrb[0].mxu0
        %v860 = vpop.f32.mrb[0].mxu0
        %861 = vdwg.mxu0
        %v862 = vmax.f32 %v857, 0.0
        %v863 = vpack.c.bf16 %v862, %v862
        %v864 = vld [vmem:[#allocation9] sm:$0xf]
        %v865 = vld [vmem:[#allocation9 + $0x4] sm:$0xf]
        %v866 = vld [vmem:[#allocation9 + $0x8] sm:$0xf]
        %v867 = vld [vmem:[#allocation9 + $0xc] sm:$0xf]
        %v868 = vld [vmem:[#allocation9 + $0x10] sm:$0xf]
        %v869 = vld [vmem:[#allocation9 + $0x14] sm:$0xf]
        %v870 = vld [vmem:[#allocation9 + $0x18] sm:$0xf]
        %v871 = vld [vmem:[#allocation9 + $0x1c] sm:$0xf]
        %v872 = vld [vmem:[#allocation9 + $0x20] sm:$0xf]
        %v873 = vld [vmem:[#allocation9 + $0x24] sm:$0xf]
        %v874 = vld [vmem:[#allocation9 + $0x28] sm:$0xf]
        %v875 = vld [vmem:[#allocation9 + $0x2c] sm:$0xf]
        %v876 = vld [vmem:[#allocation9 + $0x30] sm:$0xf]
        %v877 = vld [vmem:[#allocation9 + $0x34] sm:$0xf]
        %v878 = vld [vmem:[#allocation9 + $0x38] sm:$0xf]
        %v879 = vld [vmem:[#allocation9 + $0x3c] sm:$0xf]
        %v880 = vld [vmem:[%s6] sm:$0x1]
        %v882 = vlaneseq
        %v883 = vshrl.u32 %v882, 7
        %v884 = vsub.s32 0, %v883
        %v885 = vrot.slane %v880, %v884
        %v903 = vunpack.c.l.b16 %v864
        %v904 = vunpack.c.l.b16 %v865
        %v905 = vunpack.c.l.b16 %v866
        %v906 = vunpack.c.l.b16 %v867
        %v907 = vunpack.c.l.b16 %v868
        %v908 = vunpack.c.l.b16 %v869
        %v909 = vunpack.c.l.b16 %v870
        %v910 = vunpack.c.l.b16 %v871
        %v911 = vunpack.c.l.b16 %v872
        %v912 = vunpack.c.l.b16 %v873
        %v913 = vunpack.c.l.b16 %v874
        %v914 = vunpack.c.l.b16 %v875
        %v915 = vunpack.c.l.b16 %v876
        %v916 = vunpack.c.l.b16 %v877
        %v917 = vunpack.c.l.b16 %v878
        %v918 = vunpack.c.l.b16 %v879
        %v919 = vpack.c.b16 %v904, %v903
        %v920 = vpack.c.b16 %v906, %v905
        %v921 = vpack.c.b16 %v908, %v907
        %v922 = vpack.c.b16 %v910, %v909
        %v923 = vpack.c.b16 %v912, %v911
        %v924 = vpack.c.b16 %v914, %v913
        %v925 = vpack.c.b16 %v916, %v915
        %v926 = vpack.c.b16 %v918, %v917
        %935 = vmatprep.subr.bf16.mxu0 0
        %936 = vmatpush1.bf16.msra.mxu0 %v919
        %937 = vmatprep.subr.bf16.mxu0 0
        %938 = vmatpush1.bf16.msra.mxu0 %v920
        %939 = vmatprep.subr.bf16.mxu0 0
        %940 = vmatpush1.bf16.msra.mxu0 %v921
        %941 = vmatprep.subr.bf16.mxu0 0
        %942 = vmatpush1.bf16.msra.mxu0 %v922
        %943 = vmatprep.subr.bf16.mxu0 0
        %944 = vmatpush1.bf16.msra.mxu0 %v923
        %945 = vmatprep.subr.bf16.mxu0 0
        %946 = vmatpush1.bf16.msra.mxu0 %v924
        %947 = vmatprep.subr.bf16.mxu0 0
        %948 = vmatpush1.bf16.msra.mxu0 %v925
        %949 = vmatprep.subr.bf16.mxu0 0
        %950 = vmatpush1.bf16.msra.mxu0 %v926
        %951 = vmatprep.subr.bf16.mxu0 0
        %952 = vmatpush1.bf16.msra.mxu0 0
        %953 = vmatprep.subr.bf16.mxu0 0
        %954 = vmatpush1.bf16.msra.mxu0 0
        %955 = vmatprep.subr.bf16.mxu0 0
        %956 = vmatpush1.bf16.msra.mxu0 0
        %957 = vmatprep.subr.bf16.mxu0 0
        %958 = vmatpush1.bf16.msra.mxu0 0
        %959 = vmatprep.subr.bf16.mxu0 0
        %960 = vmatpush1.bf16.msra.mxu0 0
        %961 = vmatprep.subr.bf16.mxu0 0
        %962 = vmatpush1.bf16.msra.mxu0 0
        %963 = vmatprep.subr.bf16.mxu0 0
        %964 = vmatpush1.bf16.msra.mxu0 0
        %965 = vmatprep.subr.bf16.mxu0 0
        %966 = vmatpush1.bf16.msra.mxu0 0
        %967 = vmatprep.mubr.bf16.mxu0 0
        %968 = vmatmul.mubr.bf16.gmra.mrb[0].mxu0 %v863
        %v969 = vpop.f32.mrb[0].mxu0
        %v970 = vadd.f32 %v885, %v969
        %v971 = vpop.f32.mrb[0].mxu0
        %v972 = vpop.f32.mrb[0].mxu0
        %v973 = vpop.f32.mrb[0].mxu0
        %974 = vdwg.mxu0
        %v975 = vmax.f32 %v970, 0.0
        %v976 = vpack.c.bf16 %v975, %v975
        %v977 = vld [vmem:[#allocation11] sm:$0xff]
        %v978 = vld [vmem:[#allocation11 + $0x8] sm:$0xff]
        %v979 = vld [vmem:[#allocation11 + $0x10] sm:$0xff]
        %v980 = vld [vmem:[#allocation11 + $0x18] sm:$0xff]
        %v981 = vld [vmem:[#allocation11 + $0x20] sm:$0xff]
        %v982 = vld [vmem:[#allocation11 + $0x28] sm:$0xff]
        %v983 = vld [vmem:[#allocation11 + $0x30] sm:$0xff]
        %v984 = vld [vmem:[#allocation11 + $0x38] sm:$0xff]
        %v985 = vld [vmem:[#allocation11 + $0x40] sm:$0xff]
        %v986 = vld [vmem:[#allocation11 + $0x48] sm:$0xff]
        %v987 = vld [vmem:[#allocation11 + $0x50] sm:$0xff]
        %v988 = vld [vmem:[#allocation11 + $0x58] sm:$0xff]
        %v989 = vld [vmem:[#allocation11 + $0x60] sm:$0xff]
        %v990 = vld [vmem:[#allocation11 + $0x68] sm:$0xff]
        %v991 = vld [vmem:[#allocation11 + $0x70] sm:$0xff]
        %v992 = vld [vmem:[#allocation11 + $0x78] sm:$0xff]
        %v993 = vld [vmem:[%s8] sm:$0x3]
        %v995 = vlaneseq
        %v996 = vshrl.u32 %v995, 7
        %v997 = vsub.s32 0, %v996
        %v998 = vrot.slane %v993, %v997
        %v999 = vlaneseq
        %v1000 = vshrl.u32 %v999, 7
        %v1001 = vsub.s32 1, %v1000
        %v1002 = vrot.slane %v993, %v1001
        %v1021 = vunpack.c.l.b16 %v977
        %v1022 = vunpack.c.h.b16 %v977
        %v1023 = vunpack.c.l.b16 %v978
        %v1024 = vunpack.c.h.b16 %v978
        %v1025 = vunpack.c.l.b16 %v979
        %v1026 = vunpack.c.h.b16 %v979
        %v1027 = vunpack.c.l.b16 %v980
        %v1028 = vunpack.c.h.b16 %v980
        %v1029 = vunpack.c.l.b16 %v981
        %v1030 = vunpack.c.h.b16 %v981
        %v1031 = vunpack.c.l.b16 %v982
        %v1032 = vunpack.c.h.b16 %v982
        %v1033 = vunpack.c.l.b16 %v983
        %v1034 = vunpack.c.h.b16 %v983
        %v1035 = vunpack.c.l.b16 %v984
        %v1036 = vunpack.c.h.b16 %v984
        %v1037 = vunpack.c.l.b16 %v985
        %v1038 = vunpack.c.h.b16 %v985
        %v1039 = vunpack.c.l.b16 %v986
        %v1040 = vunpack.c.h.b16 %v986
        %v1041 = vunpack.c.l.b16 %v987
        %v1042 = vunpack.c.h.b16 %v987
        %v1043 = vunpack.c.l.b16 %v988
        %v1044 = vunpack.c.h.b16 %v988
        %v1045 = vunpack.c.l.b16 %v989
        %v1046 = vunpack.c.h.b16 %v989
        %v1047 = vunpack.c.l.b16 %v990
        %v1048 = vunpack.c.h.b16 %v990
        %v1049 = vunpack.c.l.b16 %v991
        %v1050 = vunpack.c.h.b16 %v991
        %v1051 = vunpack.c.l.b16 %v992
        %v1052 = vunpack.c.h.b16 %v992
        %v1053 = vpack.c.b16 %v1023, %v1021
        %v1054 = vpack.c.b16 %v1024, %v1022
        %v1055 = vpack.c.b16 %v1027, %v1025
        %v1056 = vpack.c.b16 %v1028, %v1026
        %v1057 = vpack.c.b16 %v1031, %v1029
        %v1058 = vpack.c.b16 %v1032, %v1030
        %v1059 = vpack.c.b16 %v1035, %v1033
        %v1060 = vpack.c.b16 %v1036, %v1034
        %v1061 = vpack.c.b16 %v1039, %v1037
        %v1062 = vpack.c.b16 %v1040, %v1038
        %v1063 = vpack.c.b16 %v1043, %v1041
        %v1064 = vpack.c.b16 %v1044, %v1042
        %v1065 = vpack.c.b16 %v1047, %v1045
        %v1066 = vpack.c.b16 %v1048, %v1046
        %v1067 = vpack.c.b16 %v1051, %v1049
        %v1068 = vpack.c.b16 %v1052, %v1050
        %1085 = vmatprep.subr.bf16.mxu0 %v1054
        %1086 = vmatpush1.bf16.msra.mxu0 %v1053
        %1087 = vmatprep.subr.bf16.mxu0 %v1056
        %1088 = vmatpush1.bf16.msra.mxu0 %v1055
        %1089 = vmatprep.subr.bf16.mxu0 %v1058
        %1090 = vmatpush1.bf16.msra.mxu0 %v1057
        %1091 = vmatprep.subr.bf16.mxu0 %v1060
        %1092 = vmatpush1.bf16.msra.mxu0 %v1059
        %1093 = vmatprep.subr.bf16.mxu0 %v1062
        %1094 = vmatpush1.bf16.msra.mxu0 %v1061
        %1095 = vmatprep.subr.bf16.mxu0 %v1064
        %1096 = vmatpush1.bf16.msra.mxu0 %v1063
        %1097 = vmatprep.subr.bf16.mxu0 %v1066
        %1098 = vmatpush1.bf16.msra.mxu0 %v1065
        %1099 = vmatprep.subr.bf16.mxu0 %v1068
        %1100 = vmatpush1.bf16.msra.mxu0 %v1067
        %1101 = vmatprep.subr.bf16.mxu0 0
        %1102 = vmatpush1.bf16.msra.mxu0 0
        %1103 = vmatprep.subr.bf16.mxu0 0
        %1104 = vmatpush1.bf16.msra.mxu0 0
        %1105 = vmatprep.subr.bf16.mxu0 0
        %1106 = vmatpush1.bf16.msra.mxu0 0
        %1107 = vmatprep.subr.bf16.mxu0 0
        %1108 = vmatpush1.bf16.msra.mxu0 0
        %1109 = vmatprep.subr.bf16.mxu0 0
        %1110 = vmatpush1.bf16.msra.mxu0 0
        %1111 = vmatprep.subr.bf16.mxu0 0
        %1112 = vmatpush1.bf16.msra.mxu0 0
        %1113 = vmatprep.subr.bf16.mxu0 0
        %1114 = vmatpush1.bf16.msra.mxu0 0
        %1115 = vmatprep.subr.bf16.mxu0 0
        %1116 = vmatpush1.bf16.msra.mxu0 0
        %1117 = vmatprep.mubr.bf16.mxu0 0
        %1118 = vmatmul.mubr.bf16.gmra.mrb[0].mxu0 %v976
        %v1119 = vpop.f32.mrb[0].mxu0
        %v1120 = vadd.f32 %v998, %v1119
        %v1121 = vpop.f32.mrb[0].mxu0
        %v1122 = vadd.f32 %v1002, %v1121
        %v1123 = vpop.f32.mrb[0].mxu0
        %v1124 = vpop.f32.mrb[0].mxu0
        %1125 = vdwg.mxu0
        %v1126 = vmax.f32 %v1122, -4.0
        %v1127 = vmin.f32 %v1126, 15.0
        %v1128 = vmul.f32 %v1127, 1.442695
        %v1129 = vpow.pop %v1128
        %1130 = vst [vmem:[%s740] sm:$0xff] %v1120
        %1131 = vst [vmem:[%s747] sm:$0xff] %v1129
        %v1132 = vld [vmem:[%s652] sm:$0xf]
        %v1133 = vunpack.c.l.bf16 %v1132
        %v1134 = vmul.f32 %v1129, %v1133
        %v1135 = vadd.f32 %v1120, %v1134
        %v1136 = vld [vmem:[#allocation12] sm:$0xf]
        %v1137 = vld [vmem:[#allocation12 + $0x4] sm:$0xf]
        %v1138 = vld [vmem:[#allocation12 + $0x8] sm:$0xf]
        %v1139 = vld [vmem:[#allocation12 + $0xc] sm:$0xf]
        %v1140 = vld [vmem:[#allocation12 + $0x10] sm:$0xf]
        %v1141 = vld [vmem:[#allocation12 + $0x14] sm:$0xf]
        %v1142 = vld [vmem:[#allocation12 + $0x18] sm:$0xf]
        %v1143 = vld [vmem:[#allocation12 + $0x1c] sm:$0xf]
        %v1144 = vld [vmem:[#allocation12 + $0x20] sm:$0xf]
        %v1145 = vld [vmem:[#allocation12 + $0x24] sm:$0xf]
        %v1146 = vld [vmem:[#allocation12 + $0x28] sm:$0xf]
        %v1147 = vld [vmem:[#allocation12 + $0x2c] sm:$0xf]
        %v1148 = vld [vmem:[#allocation12 + $0x30] sm:$0xf]
        %v1149 = vld [vmem:[#allocation12 + $0x34] sm:$0xf]
        %v1150 = vld [vmem:[#allocation12 + $0x38] sm:$0xf]
        %v1151 = vld [vmem:[#allocation12 + $0x3c] sm:$0xf]
        %v1152 = vpack.c.bf16 %v1135, %v1135
        %v1153 = vld [vmem:[#allocation14] sm:$0xf]
        %v1154 = vld [vmem:[#allocation14 + $0x4] sm:$0xf]
        %v1155 = vld [vmem:[#allocation14 + $0x8] sm:$0xf]
        %v1156 = vld [vmem:[#allocation14 + $0xc] sm:$0xf]
        %v1157 = vld [vmem:[#allocation14 + $0x10] sm:$0xf]
        %v1158 = vld [vmem:[#allocation14 + $0x14] sm:$0xf]
        %v1159 = vld [vmem:[#allocation14 + $0x18] sm:$0xf]
        %v1160 = vld [vmem:[#allocation14 + $0x1c] sm:$0xf]
        %v1161 = vld [vmem:[#allocation14 + $0x20] sm:$0xf]
        %v1162 = vld [vmem:[#allocation14 + $0x24] sm:$0xf]
        %v1163 = vld [vmem:[#allocation14 + $0x28] sm:$0xf]
        %v1164 = vld [vmem:[#allocation14 + $0x2c] sm:$0xf]
        %v1165 = vld [vmem:[#allocation14 + $0x30] sm:$0xf]
        %v1166 = vld [vmem:[#allocation14 + $0x34] sm:$0xf]
        %v1167 = vld [vmem:[#allocation14 + $0x38] sm:$0xf]
        %v1168 = vld [vmem:[#allocation14 + $0x3c] sm:$0xf]
        %v1185 = vunpack.c.l.b16 %v1153
        %v1186 = vunpack.c.l.b16 %v1154
        %v1187 = vunpack.c.l.b16 %v1155
        %v1188 = vunpack.c.l.b16 %v1156
        %v1189 = vunpack.c.l.b16 %v1157
        %v1190 = vunpack.c.l.b16 %v1158
        %v1191 = vunpack.c.l.b16 %v1159
        %v1192 = vunpack.c.l.b16 %v1160
        %v1193 = vunpack.c.l.b16 %v1161
        %v1194 = vunpack.c.l.b16 %v1162
        %v1195 = vunpack.c.l.b16 %v1163
        %v1196 = vunpack.c.l.b16 %v1164
        %v1197 = vunpack.c.l.b16 %v1165
        %v1198 = vunpack.c.l.b16 %v1166
        %v1199 = vunpack.c.l.b16 %v1167
        %v1200 = vunpack.c.l.b16 %v1168
        %v1201 = vpack.c.b16 %v1186, %v1185
        %v1202 = vpack.c.b16 %v1188, %v1187
        %v1203 = vpack.c.b16 %v1190, %v1189
        %v1204 = vpack.c.b16 %v1192, %v1191
        %v1205 = vpack.c.b16 %v1194, %v1193
        %v1206 = vpack.c.b16 %v1196, %v1195
        %v1207 = vpack.c.b16 %v1198, %v1197
        %v1208 = vpack.c.b16 %v1200, %v1199
        %1217 = vmatprep.subr.bf16.mxu0 0
        %1218 = vmatpush1.bf16.msra.mxu0 %v1201
        %1219 = vmatprep.subr.bf16.mxu0 0
        %1220 = vmatpush1.bf16.msra.mxu0 %v1202
        %1221 = vmatprep.subr.bf16.mxu0 0
        %1222 = vmatpush1.bf16.msra.mxu0 %v1203
        %1223 = vmatprep.subr.bf16.mxu0 0
        %1224 = vmatpush1.bf16.msra.mxu0 %v1204
        %1225 = vmatprep.subr.bf16.mxu0 0
        %1226 = vmatpush1.bf16.msra.mxu0 %v1205
        %1227 = vmatprep.subr.bf16.mxu0 0
        %1228 = vmatpush1.bf16.msra.mxu0 %v1206
        %1229 = vmatprep.subr.bf16.mxu0 0
        %1230 = vmatpush1.bf16.msra.mxu0 %v1207
        %1231 = vmatprep.subr.bf16.mxu0 0
        %1232 = vmatpush1.bf16.msra.mxu0 %v1208
        %1233 = vmatprep.subr.bf16.mxu0 0
        %1234 = vmatpush1.bf16.msra.mxu0 0
        %1235 = vmatprep.subr.bf16.mxu0 0
        %1236 = vmatpush1.bf16.msra.mxu0 0
        %1237 = vmatprep.subr.bf16.mxu0 0
        %1238 = vmatpush1.bf16.msra.mxu0 0
        %1239 = vmatprep.subr.bf16.mxu0 0
        %1240 = vmatpush1.bf16.msra.mxu0 0
        %1241 = vmatprep.subr.bf16.mxu0 0
        %1242 = vmatpush1.bf16.msra.mxu0 0
        %1243 = vmatprep.subr.bf16.mxu0 0
        %1244 = vmatpush1.bf16.msra.mxu0 0
        %1245 = vmatprep.subr.bf16.mxu0 0
        %1246 = vmatpush1.bf16.msra.mxu0 0
        %1247 = vmatprep.subr.bf16.mxu0 0
        %1248 = vmatpush1.bf16.msra.mxu0 0
        %1249 = vmatprep.mubr.bf16.mxu0 0
        %1250 = vmatmul.mubr.bf16.gmra.mrb[0].mxu0 %v1152
        %v1251 = vpop.f32.mrb[0].mxu0
        %v1252 = vadd.f32 0.0, %v1251
        %v1253 = vpop.f32.mrb[0].mxu0
        %v1254 = vpop.f32.mrb[0].mxu0
        %v1255 = vpop.f32.mrb[0].mxu0
        %1256 = vdwg.mxu0
        %v1273 = vunpack.c.l.b16 %v1136
        %v1274 = vunpack.c.l.b16 %v1137
        %v1275 = vunpack.c.l.b16 %v1138
        %v1276 = vunpack.c.l.b16 %v1139
        %v1277 = vunpack.c.l.b16 %v1140
        %v1278 = vunpack.c.l.b16 %v1141
        %v1279 = vunpack.c.l.b16 %v1142
        %v1280 = vunpack.c.l.b16 %v1143
        %v1281 = vunpack.c.l.b16 %v1144
        %v1282 = vunpack.c.l.b16 %v1145
        %v1283 = vunpack.c.l.b16 %v1146
        %v1284 = vunpack.c.l.b16 %v1147
        %v1285 = vunpack.c.l.b16 %v1148
        %v1286 = vunpack.c.l.b16 %v1149
        %v1287 = vunpack.c.l.b16 %v1150
        %v1288 = vunpack.c.l.b16 %v1151
        %v1289 = vpack.c.b16 %v1274, %v1273
        %v1290 = vpack.c.b16 %v1276, %v1275
        %v1291 = vpack.c.b16 %v1278, %v1277
        %v1292 = vpack.c.b16 %v1280, %v1279
        %v1293 = vpack.c.b16 %v1282, %v1281
        %v1294 = vpack.c.b16 %v1284, %v1283
        %v1295 = vpack.c.b16 %v1286, %v1285
        %v1296 = vpack.c.b16 %v1288, %v1287
        %1305 = vmatprep.subr.bf16.mxu0 0
        %1306 = vmatpush1.bf16.msra.mxu0 %v1289
        %1307 = vmatprep.subr.bf16.mxu0 0
        %1308 = vmatpush1.bf16.msra.mxu0 %v1290
        %1309 = vmatprep.subr.bf16.mxu0 0
        %1310 = vmatpush1.bf16.msra.mxu0 %v1291
        %1311 = vmatprep.subr.bf16.mxu0 0
        %1312 = vmatpush1.bf16.msra.mxu0 %v1292
        %1313 = vmatprep.subr.bf16.mxu0 0
        %1314 = vmatpush1.bf16.msra.mxu0 %v1293
        %1315 = vmatprep.subr.bf16.mxu0 0
        %1316 = vmatpush1.bf16.msra.mxu0 %v1294
        %1317 = vmatprep.subr.bf16.mxu0 0
        %1318 = vmatpush1.bf16.msra.mxu0 %v1295
        %1319 = vmatprep.subr.bf16.mxu0 0
        %1320 = vmatpush1.bf16.msra.mxu0 %v1296
        %1321 = vmatprep.subr.bf16.mxu0 0
        %1322 = vmatpush1.bf16.msra.mxu0 0
        %1323 = vmatprep.subr.bf16.mxu0 0
        %1324 = vmatpush1.bf16.msra.mxu0 0
        %1325 = vmatprep.subr.bf16.mxu0 0
        %1326 = vmatpush1.bf16.msra.mxu0 0
        %1327 = vmatprep.subr.bf16.mxu0 0
        %1328 = vmatpush1.bf16.msra.mxu0 0
        %1329 = vmatprep.subr.bf16.mxu0 0
        %1330 = vmatpush1.bf16.msra.mxu0 0
        %1331 = vmatprep.subr.bf16.mxu0 0
        %1332 = vmatpush1.bf16.msra.mxu0 0
        %1333 = vmatprep.subr.bf16.mxu0 0
        %1334 = vmatpush1.bf16.msra.mxu0 0
        %1335 = vmatprep.subr.bf16.mxu0 0
        %1336 = vmatpush1.bf16.msra.mxu0 0
        %1337 = vmatprep.mubr.bf16.mxu0 0
        %1338 = vmatmul.mubr.bf16.gmra.mrb[0].mxu0 %v750
        %v1339 = vpop.f32.mrb[0].mxu0
        %v1340 = vadd.f32 %v1252, %v1339
        %v1341 = vpop.f32.mrb[0].mxu0
        %v1342 = vpop.f32.mrb[0].mxu0
        %v1343 = vpop.f32.mrb[0].mxu0
        %1344 = vdwg.mxu0
        %v1345 = vld [vmem:[%s11] sm:$0x1]
        %v1347 = vlaneseq
        %v1348 = vshrl.u32 %v1347, 7
        %v1349 = vsub.s32 0, %v1348
        %v1350 = vrot.slane %v1345, %v1349
        %v1352 = vadd.f32 %v1340, %v1350
        %v1353 = vmax.f32 %v1352, 0.0
        %v1354 = vpack.c.bf16 %v1353, %v1353
        %v1355 = vld [vmem:[#allocation15] sm:$0xf]
        %v1356 = vld [vmem:[#allocation15 + $0x4] sm:$0xf]
        %v1357 = vld [vmem:[#allocation15 + $0x8] sm:$0xf]
        %v1358 = vld [vmem:[#allocation15 + $0xc] sm:$0xf]
        %v1359 = vld [vmem:[#allocation15 + $0x10] sm:$0xf]
        %v1360 = vld [vmem:[#allocation15 + $0x14] sm:$0xf]
        %v1361 = vld [vmem:[#allocation15 + $0x18] sm:$0xf]
        %v1362 = vld [vmem:[#allocation15 + $0x1c] sm:$0xf]
        %v1363 = vld [vmem:[#allocation15 + $0x20] sm:$0xf]
        %v1364 = vld [vmem:[#allocation15 + $0x24] sm:$0xf]
        %v1365 = vld [vmem:[#allocation15 + $0x28] sm:$0xf]
        %v1366 = vld [vmem:[#allocation15 + $0x2c] sm:$0xf]
        %v1367 = vld [vmem:[#allocation15 + $0x30] sm:$0xf]
        %v1368 = vld [vmem:[#allocation15 + $0x34] sm:$0xf]
        %v1369 = vld [vmem:[#allocation15 + $0x38] sm:$0xf]
        %v1370 = vld [vmem:[#allocation15 + $0x3c] sm:$0xf]
        %v1371 = vld [vmem:[%s13] sm:$0x1]
        %v1373 = vlaneseq
        %v1374 = vshrl.u32 %v1373, 7
        %v1375 = vsub.s32 0, %v1374
        %v1376 = vrot.slane %v1371, %v1375
        %v1394 = vunpack.c.l.b16 %v1355
        %v1395 = vunpack.c.l.b16 %v1356
        %v1396 = vunpack.c.l.b16 %v1357
        %v1397 = vunpack.c.l.b16 %v1358
        %v1398 = vunpack.c.l.b16 %v1359
        %v1399 = vunpack.c.l.b16 %v1360
        %v1400 = vunpack.c.l.b16 %v1361
        %v1401 = vunpack.c.l.b16 %v1362
        %v1402 = vunpack.c.l.b16 %v1363
        %v1403 = vunpack.c.l.b16 %v1364
        %v1404 = vunpack.c.l.b16 %v1365
        %v1405 = vunpack.c.l.b16 %v1366
        %v1406 = vunpack.c.l.b16 %v1367
        %v1407 = vunpack.c.l.b16 %v1368
        %v1408 = vunpack.c.l.b16 %v1369
        %v1409 = vunpack.c.l.b16 %v1370
        %v1410 = vpack.c.b16 %v1395, %v1394
        %v1411 = vpack.c.b16 %v1397, %v1396
        %v1412 = vpack.c.b16 %v1399, %v1398
        %v1413 = vpack.c.b16 %v1401, %v1400
        %v1414 = vpack.c.b16 %v1403, %v1402
        %v1415 = vpack.c.b16 %v1405, %v1404
        %v1416 = vpack.c.b16 %v1407, %v1406
        %v1417 = vpack.c.b16 %v1409, %v1408
        %1426 = vmatprep.subr.bf16.mxu0 0
        %1427 = vmatpush1.bf16.msra.mxu0 %v1410
        %1428 = vmatprep.subr.bf16.mxu0 0
        %1429 = vmatpush1.bf16.msra.mxu0 %v1411
        %1430 = vmatprep.subr.bf16.mxu0 0
        %1431 = vmatpush1.bf16.msra.mxu0 %v1412
        %1432 = vmatprep.subr.bf16.mxu0 0
        %1433 = vmatpush1.bf16.msra.mxu0 %v1413
        %1434 = vmatprep.subr.bf16.mxu0 0
        %1435 = vmatpush1.bf16.msra.mxu0 %v1414
        %1436 = vmatprep.subr.bf16.mxu0 0
        %1437 = vmatpush1.bf16.msra.mxu0 %v1415
        %1438 = vmatprep.subr.bf16.mxu0 0
        %1439 = vmatpush1.bf16.msra.mxu0 %v1416
        %1440 = vmatprep.subr.bf16.mxu0 0
        %1441 = vmatpush1.bf16.msra.mxu0 %v1417
        %1442 = vmatprep.subr.bf16.mxu0 0
        %1443 = vmatpush1.bf16.msra.mxu0 0
        %1444 = vmatprep.subr.bf16.mxu0 0
        %1445 = vmatpush1.bf16.msra.mxu0 0
        %1446 = vmatprep.subr.bf16.mxu0 0
        %1447 = vmatpush1.bf16.msra.mxu0 0
        %1448 = vmatprep.subr.bf16.mxu0 0
        %1449 = vmatpush1.bf16.msra.mxu0 0
        %1450 = vmatprep.subr.bf16.mxu0 0
        %1451 = vmatpush1.bf16.msra.mxu0 0
        %1452 = vmatprep.subr.bf16.mxu0 0
        %1453 = vmatpush1.bf16.msra.mxu0 0
        %1454 = vmatprep.subr.bf16.mxu0 0
        %1455 = vmatpush1.bf16.msra.mxu0 0
        %1456 = vmatprep.subr.bf16.mxu0 0
        %1457 = vmatpush1.bf16.msra.mxu0 0
        %1458 = vmatprep.mubr.bf16.mxu0 0
        %1459 = vmatmul.mubr.bf16.gmra.mrb[0].mxu0 %v1354
        %v1460 = vpop.f32.mrb[0].mxu0
        %v1461 = vadd.f32 %v1376, %v1460
        %v1462 = vpop.f32.mrb[0].mxu0
        %v1463 = vpop.f32.mrb[0].mxu0
        %v1464 = vpop.f32.mrb[0].mxu0
        %1465 = vdwg.mxu0
        %v1466 = vmax.f32 %v1461, 0.0
        %v1467 = vpack.c.bf16 %v1466, %v1466
        %v1468 = vld [vmem:[#allocation17] sm:$0xf]
        %v1469 = vld [vmem:[#allocation17 + $0x4] sm:$0xf]
        %v1470 = vld [vmem:[#allocation17 + $0x8] sm:$0xf]
        %v1471 = vld [vmem:[#allocation17 + $0xc] sm:$0xf]
        %v1472 = vld [vmem:[#allocation17 + $0x10] sm:$0xf]
        %v1473 = vld [vmem:[#allocation17 + $0x14] sm:$0xf]
        %v1474 = vld [vmem:[#allocation17 + $0x18] sm:$0xf]
        %v1475 = vld [vmem:[#allocation17 + $0x1c] sm:$0xf]
        %v1476 = vld [vmem:[#allocation17 + $0x20] sm:$0xf]
        %v1477 = vld [vmem:[#allocation17 + $0x24] sm:$0xf]
        %v1478 = vld [vmem:[#allocation17 + $0x28] sm:$0xf]
        %v1479 = vld [vmem:[#allocation17 + $0x2c] sm:$0xf]
        %v1480 = vld [vmem:[#allocation17 + $0x30] sm:$0xf]
        %v1481 = vld [vmem:[#allocation17 + $0x34] sm:$0xf]
        %v1482 = vld [vmem:[#allocation17 + $0x38] sm:$0xf]
        %v1483 = vld [vmem:[#allocation17 + $0x3c] sm:$0xf]
        %v1484 = vld [vmem:[%s15] sm:$0x1]
        %v1486 = vlaneseq
        %v1487 = vshrl.u32 %v1486, 7
        %v1488 = vsub.s32 0, %v1487
        %v1489 = vrot.slane %v1484, %v1488
        %v1507 = vunpack.c.l.b16 %v1468
        %v1508 = vunpack.c.l.b16 %v1469
        %v1509 = vunpack.c.l.b16 %v1470
        %v1510 = vunpack.c.l.b16 %v1471
        %v1511 = vunpack.c.l.b16 %v1472
        %v1512 = vunpack.c.l.b16 %v1473
        %v1513 = vunpack.c.l.b16 %v1474
        %v1514 = vunpack.c.l.b16 %v1475
        %v1515 = vunpack.c.l.b16 %v1476
        %v1516 = vunpack.c.l.b16 %v1477
        %v1517 = vunpack.c.l.b16 %v1478
        %v1518 = vunpack.c.l.b16 %v1479
        %v1519 = vunpack.c.l.b16 %v1480
        %v1520 = vunpack.c.l.b16 %v1481
        %v1521 = vunpack.c.l.b16 %v1482
        %v1522 = vunpack.c.l.b16 %v1483
        %v1523 = vpack.c.b16 %v1508, %v1507
        %v1524 = vpack.c.b16 %v1510, %v1509
        %v1525 = vpack.c.b16 %v1512, %v1511
        %v1526 = vpack.c.b16 %v1514, %v1513
        %v1527 = vpack.c.b16 %v1516, %v1515
        %v1528 = vpack.c.b16 %v1518, %v1517
        %v1529 = vpack.c.b16 %v1520, %v1519
        %v1530 = vpack.c.b16 %v1522, %v1521
        %1539 = vmatprep.subr.bf16.mxu0 0
        %1540 = vmatpush1.bf16.msra.mxu0 %v1523
        %1541 = vmatprep.subr.bf16.mxu0 0
        %1542 = vmatpush1.bf16.msra.mxu0 %v1524
        %1543 = vmatprep.subr.bf16.mxu0 0
        %1544 = vmatpush1.bf16.msra.mxu0 %v1525
        %1545 = vmatprep.subr.bf16.mxu0 0
        %1546 = vmatpush1.bf16.msra.mxu0 %v1526
        %1547 = vmatprep.subr.bf16.mxu0 0
        %1548 = vmatpush1.bf16.msra.mxu0 %v1527
        %1549 = vmatprep.subr.bf16.mxu0 0
        %1550 = vmatpush1.bf16.msra.mxu0 %v1528
        %1551 = vmatprep.subr.bf16.mxu0 0
        %1552 = vmatpush1.bf16.msra.mxu0 %v1529
        %1553 = vmatprep.subr.bf16.mxu0 0
        %1554 = vmatpush1.bf16.msra.mxu0 %v1530
        %1555 = vmatprep.subr.bf16.mxu0 0
        %1556 = vmatpush1.bf16.msra.mxu0 0
        %1557 = vmatprep.subr.bf16.mxu0 0
        %1558 = vmatpush1.bf16.msra.mxu0 0
        %1559 = vmatprep.subr.bf16.mxu0 0
        %1560 = vmatpush1.bf16.msra.mxu0 0
        %1561 = vmatprep.subr.bf16.mxu0 0
        %1562 = vmatpush1.bf16.msra.mxu0 0
        %1563 = vmatprep.subr.bf16.mxu0 0
        %1564 = vmatpush1.bf16.msra.mxu0 0
        %1565 = vmatprep.subr.bf16.mxu0 0
        %1566 = vmatpush1.bf16.msra.mxu0 0
        %1567 = vmatprep.subr.bf16.mxu0 0
        %1568 = vmatpush1.bf16.msra.mxu0 0
        %1569 = vmatprep.subr.bf16.mxu0 0
        %1570 = vmatpush1.bf16.msra.mxu0 0
        %1571 = vmatprep.mubr.bf16.mxu0 0
        %1572 = vmatmul.mubr.bf16.gmra.mrb[0].mxu0 %v1467
        %v1573 = vpop.f32.mrb[0].mxu0
        %v1574 = vadd.f32 %v1489, %v1573
        %v1575 = vpop.f32.mrb[0].mxu0
        %v1576 = vpop.f32.mrb[0].mxu0
        %v1577 = vpop.f32.mrb[0].mxu0
        %1578 = vdwg.mxu0
        %v1579 = vtanh.pop %v1574
        %v1580 = vstv %s749
        %v1581 = vmul.f32 %v1580, %v1579
        %1582 = vst [vmem:[%s733] sm:$0xff] %v1581
        %s1583 = sand.u32 %s400, 1
        %s1584 = scalar_lea.sflag [#allocation5], %s1583
        %s1585 = sand.u32 %s400, 1
        %s1586 = smul.addr %s1585, 8
        %s1587 = scalar_lea.vmem [#allocation18], %s1586
        %s1588 = sand.u32 %s46, 1
        %s1589 = scalar_lea.sflag [#allocation20], %s1588
        %s1590 = sand.u32 %s426, 1
        %s1591 = smul.addr %s1590, 8
        %s1592 = scalar_lea.vmem [#allocation19], %s1591
        %s1593 = sand.u32 %s46, 1
        %s1594 = scalar_lea.sflag [#allocation20], %s1593
        %s1595 = sand.u32 %s452, 1
        %s1596 = smul.addr %s1595, 8
        %s1597 = scalar_lea.vmem [#allocation21], %s1596
        // Predicated region
        $region121: #{tpu_custom_call.1} parent=83 // pred_check
          %p1598 = pneg %p410
        $region122: #{tpu_custom_call.1} parent=83 // pred_check_branch
          %1600 = sbr.rel (%p1598) target = $region124
        $region123: #{tpu_custom_call.1} parent=83 // pred_region
          %s1602 = ssub.s32 128, 128
          %1603 = vsyncadd %s1584, %s1602
          %s1604 = smul.addr %s46, 128
          %s1605 = scalar_lea.hbm %s16, %s1604
          %s1607 = sshll.u32 %s1587, 4
          %s1608 = int_to_ptr.vmem [resolvable:$true] %s1607
          %1610 = dma.vmem_to_hbm [thread:$0]  %s1608, 128, %s1605, %s1584
        $region124: #{tpu_custom_call.1} parent=83 // pred_fallthru
          _
        // Predicated region
        $region125: #{tpu_custom_call.1} parent=83 // pred_check
          %p1611 = pneg %p436
        $region126: #{tpu_custom_call.1} parent=83 // pred_check_branch
          %1613 = sbr.rel (%p1611) target = $region128
        $region127: #{tpu_custom_call.1} parent=83 // pred_region
          %s1615 = ssub.s32 128, 128
          %1616 = vsyncadd %s1589, %s1615
          %s1617 = smul.addr %s46, 128
          %s1618 = scalar_lea.hbm %s17, %s1617
          %s1620 = sshll.u32 %s1592, 4
          %s1621 = int_to_ptr.vmem [resolvable:$true] %s1620
          %1623 = dma.vmem_to_hbm [thread:$0]  %s1621, 128, %s1618, %s1589
        $region128: #{tpu_custom_call.1} parent=83 // pred_fallthru
          _
        // Predicated region
        $region129: #{tpu_custom_call.1} parent=83 // pred_check
          %p1624 = pneg %p462
        $region130: #{tpu_custom_call.1} parent=83 // pred_check_branch
          %1626 = sbr.rel (%p1624) target = $region132
        $region131: #{tpu_custom_call.1} parent=83 // pred_region
          %s1628 = ssub.s32 128, 128
          %1629 = vsyncadd %s1594, %s1628
          %s1630 = smul.addr %s46, 128
          %s1631 = scalar_lea.hbm %s18, %s1630
          %s1633 = sshll.u32 %s1597, 4
          %s1634 = int_to_ptr.vmem [resolvable:$true] %s1633
          %1636 = dma.vmem_to_hbm [thread:$0]  %s1634, 128, %s1631, %s1594
        $region132: #{tpu_custom_call.1} parent=83 // pred_fallthru
          _
      $region84: #{tpu_custom_call.1} parent=5 // pred_fallthru
        _
      %p1637 = scmp.le.s32.totalorder 2, %s41
      // Predicated region
      $region133: #{tpu_custom_call.1} parent=5 // pred_check
        %p1638 = pneg %p1637
      $region134: #{tpu_custom_call.1} parent=5 // pred_check_branch
        %1640 = sbr.rel (%p1638) target = $region136
      $region135: #{tpu_custom_call.1} parent=5 // pred_region
        %s1641 = ssub.s32 %s41, 2
        // Predicated region
        $region137: #{tpu_custom_call.1} parent=135 // pred_check
          %p1642 = pneg %p416
        $region138: #{tpu_custom_call.1} parent=135 // pred_check_branch
          %1644 = sbr.rel (%p1642) target = $region140
        $region139: #{tpu_custom_call.1} parent=135 // pred_region
          %s1645 = sand.u32 %s401, 1
          %s1646 = scalar_lea.sflag [#allocation5], %s1645
          %s1647 = sand.u32 %s401, 1
          %s1648 = smul.addr %s1647, 8
          %s1649 = scalar_lea.vmem [#allocation18], %s1648
          %1650 = dma.done %s1646, 128
        $region140: #{tpu_custom_call.1} parent=135 // pred_fallthru
          _
        // Predicated region
        $region141: #{tpu_custom_call.1} parent=135 // pred_check
          %p1651 = pneg %p442
        $region142: #{tpu_custom_call.1} parent=135 // pred_check_branch
          %1653 = sbr.rel (%p1651) target = $region144
        $region143: #{tpu_custom_call.1} parent=135 // pred_region
          %s1654 = sand.u32 %s47, 1
          %s1655 = scalar_lea.sflag [#allocation20], %s1654
          %s1656 = sand.u32 %s427, 1
          %s1657 = smul.addr %s1656, 8
          %s1658 = scalar_lea.vmem [#allocation19], %s1657
          %1659 = dma.done %s1655, 128
        $region144: #{tpu_custom_call.1} parent=135 // pred_fallthru
          _
        // Predicated region
        $region145: #{tpu_custom_call.1} parent=135 // pred_check
          %p1660 = pneg %p468
        $region146: #{tpu_custom_call.1} parent=135 // pred_check_branch
          %1662 = sbr.rel (%p1660) target = $region148
        $region147: #{tpu_custom_call.1} parent=135 // pred_region
          %s1663 = sand.u32 %s47, 1
          %s1664 = scalar_lea.sflag [#allocation20], %s1663
          %s1665 = sand.u32 %s453, 1
          %s1666 = smul.addr %s1665, 8
          %s1667 = scalar_lea.vmem [#allocation21], %s1666
          %1668 = dma.done %s1664, 128
        $region148: #{tpu_custom_call.1} parent=135 // pred_fallthru
          _
      $region136: #{tpu_custom_call.1} parent=5 // pred_fallthru
        _
    $region6: #{tpu_custom_call.1} parent=1 // loop_footer
      %s45 = sadd.s32 1, %s41
    $region7: #{tpu_custom_call.1} parent=1 // loop_footer_branch
      %40 = sbr.rel target = $region3
    $region8: #{tpu_custom_call.1} parent=1 // loop_exit
      _
    %1669 = vsyncpa [#allocation4], 1
    %s1670 = scalar_lea.sflag [#allocation4], 1
    %1671 = vsyncpa %s1670, 1
    %1672 = vsyncpa [#allocation7], 1
    %s1673 = scalar_lea.sflag [#allocation7], 1
    %1674 = vsyncpa %s1673, 1
    %1675 = vsyncpa [#allocation10], 1
    %1676 = vsyncpa [#allocation13], 1
    %1677 = vsyncpa [#allocation16], 1
    %1678 = vsyncpa [#allocation5], 1
    %s1679 = scalar_lea.sflag [#allocation5], 1
    %1680 = vsyncpa %s1679, 1
    %1681 = vsyncpa [#allocation20], 1
    %s1682 = scalar_lea.sflag [#allocation20], 1
    %1683 = vsyncpa %s1682, 1

</llo_original>
